<compile_context>
chip_gen: v7x
topology: tpu7x:2x2x1
jax: 0.10.0
libtpu: 0.0.40
codegen_flags: <defaults>
</compile_context>

<pallas_src>
import functools
import math

import jax
import jax.numpy as jnp
from jax import lax
from jax.experimental import pallas as pl
from jax.experimental.pallas import tpu as pltpu


# ------------------------------ fused stage kernel -------------------------- #

def _stage_kernel(x_ref, pos_ref, kbias_ref,
                  wmlp_ref, gamma_ref, beta_ref,
                  gt_ref, wq1_ref, wkv1_ref, wo1_ref,
                  wffn1_ref, wffn2_ref,
                  wq2_ref, wkv2_ref, wo2_ref,
                  y_ref, *maybe_attn,
                  num_heads, scale, with_attn):
    attn_ref = maybe_attn[0] if with_attn else None

    Bb, T, Cin = x_ref.shape
    C = wmlp_ref.shape[1]
    G = gt_ref.shape[0]
    H = num_heads
    Dh = C // H
    R = Bb * T

    # contract last dim of both operands (no in-loop kh.T transpose)
    dn = (((1,), (1,)), ((), ()))

    # ---- stage MLP: Linear(bias=False) + LayerNorm + GELU -------------------
    xf = x_ref[...].reshape(R, Cin)                                    # [R, Cin]
    xm = jnp.dot(xf.astype(jnp.bfloat16), wmlp_ref[...],
                 preferred_element_type=jnp.float32)                   # [R, C] f32
    mu = jnp.mean(xm, axis=-1, keepdims=True)
    var = jnp.mean(jnp.square(xm - mu), axis=-1, keepdims=True)
    xm = (xm - mu) * lax.rsqrt(var + 1e-5)
    xm = xm * gamma_ref[...] + beta_ref[...]
    x = jax.nn.gelu(xm, approximate=True)                              # [R, C] f32

    # ---- GPBlock -------------------------------------------------------------
    kv = x + pos_ref[...].reshape(R, C).astype(jnp.float32)            # fused pos add
    kv_bf = kv.astype(jnp.bfloat16)

    # big flattened projections, bf16 x bf16 -> f32, cast outputs to bf16 once
    kv1 = jnp.dot(kv_bf, wkv1_ref[...],
                  preferred_element_type=jnp.float32).astype(jnp.bfloat16)   # [R, 2C]
    q2 = jnp.dot(kv_bf, wq2_ref[...],
                 preferred_element_type=jnp.float32).astype(jnp.bfloat16)    # [R, C]
    qg = jnp.dot(gt_ref[...], wq1_ref[...],
                 preferred_element_type=jnp.float32).astype(jnp.bfloat16)    # [G, C]

    # ---- grouping attention: group tokens attend to the sequence ------------
    grouped_rows = []
    attn_rows = []
    for b in range(Bb):                                   # static, small
        kb = jnp.broadcast_to(kbias_ref[b], (G, T))       # hoisted broadcast
        kv1_b = kv1[b * T:(b + 1) * T]                     # [T, 2C] bf16
        head_outs = []
        head_ps = []
        for h in range(H):                                 # static head loop
            lo, hi = h * Dh, (h + 1) * Dh
            qh = qg[:, lo:hi]                              # [G, Dh] bf16
            kh = kv1_b[:, lo:hi]                           # [T, Dh] bf16
            vh = kv1_b[:, C + lo:C + hi]                   # [T, Dh] bf16
            s = lax.dot_general(qh, kh, dn,
                                preferred_element_type=jnp.float32)     # [G, T]
            s = s * scale + kb
            s = s - jnp.max(s, axis=-1, keepdims=True)
            e = jnp.exp(s)
            p = e * pl.reciprocal(jnp.sum(e, axis=-1, keepdims=True), approx=True)
            if with_attn:
                head_ps.append(p)
            head_outs.append(jnp.dot(p.astype(jnp.bfloat16), vh,
                                     preferred_element_type=jnp.float32))  # [G, Dh]
        grouped_rows.append(jnp.concatenate(head_outs, axis=-1))        # [G, C]
        if with_attn:
            attn_rows.append(jnp.stack(head_ps, axis=0))                # [H, G, T]

    grouped = jnp.concatenate(grouped_rows, axis=0)                      # [Bb*G, C]
    # single dense Wo1 matmul for all heads / batches
    grouped = jnp.dot(grouped.astype(jnp.bfloat16), wo1_ref[...],
                      preferred_element_type=jnp.float32)                # [Bb*G, C]

    # ---- mixer FFN on group tokens (residual) --------------------------------
    hdn = jax.nn.gelu(jnp.dot(grouped.astype(jnp.bfloat16), wffn1_ref[...],
                              preferred_element_type=jnp.float32),
                      approximate=True)
    grouped = grouped + jnp.dot(hdn.astype(jnp.bfloat16), wffn2_ref[...],
                                preferred_element_type=jnp.float32)

    # ---- ungrouping attention: sequence attends to group tokens -------------
    kv2 = jnp.dot(grouped.astype(jnp.bfloat16), wkv2_ref[...],
                  preferred_element_type=jnp.float32).astype(jnp.bfloat16)  # [Bb*G, 2C]

    un_rows = []
    for b in range(Bb):
        q2_b = q2[b * T:(b + 1) * T]                       # [T, C] bf16
        kv2_b = kv2[b * G:(b + 1) * G]                     # [G, 2C] bf16
        head_outs = []
        for h in range(H):
            lo, hi = h * Dh, (h + 1) * Dh
            qh = q2_b[:, lo:hi]                            # [T, Dh]
            kh = kv2_b[:, lo:hi]                           # [G, Dh]
            vh = kv2_b[:, C + lo:C + hi]                   # [G, Dh]
            s = lax.dot_general(qh, kh, dn,
                                preferred_element_type=jnp.float32) * scale  # [T, G]
            s = s - jnp.max(s, axis=-1, keepdims=True)
            e = jnp.exp(s)
            p = e * pl.reciprocal(jnp.sum(e, axis=-1, keepdims=True), approx=True)
            head_outs.append(jnp.dot(p.astype(jnp.bfloat16), vh,
                                     preferred_element_type=jnp.float32))    # [T, Dh]
        un_rows.append(jnp.concatenate(head_outs, axis=-1))                  # [T, C]

    ungrouped = jnp.concatenate(un_rows, axis=0)                              # [R, C]
    out = jnp.dot(ungrouped.astype(jnp.bfloat16), wo2_ref[...],
                  preferred_element_type=jnp.float32)                         # [R, C]

    # fused residual + single full-block store
    y_ref[...] = (x + out).reshape(Bb, T, C).astype(y_ref.dtype)

    if with_attn:
        attn = jnp.stack(attn_rows, axis=0)                                   # [Bb,H,G,T]
        attn_ref[...] = attn.astype(attn_ref.dtype)


# --------------------------------- wrapper ----------------------------------- #

def _choose_block_batch(B, T, target_rows=128, max_rows=2048):
    """Batches per grid step: aim for >=128 M-rows, keep >=2 grid steps (megacore)."""
    divisors = [d for d in range(1, B + 1) if B % d == 0]
    cands = [d for d in divisors if d * T <= max_rows] or [1]
    meets = [d for d in cands if d * T >= target_rows and B // d >= 2]
    if meets:
        return min(meets)
    two_step = [d for d in cands if B // d >= 2]
    if two_step:
        return max(two_step)
    return max(cands)


def _vmem_limit_bytes(p, Bb, T, Cin, C, G, H, with_attn):
    nbytes = lambda a: a.size * a.dtype.itemsize
    weight_keys = ("W_mlp", "gamma", "beta", "group_tokens", "Wq1", "Wkv1",
                   "Wo1", "Wffn1", "Wffn2", "Wq2", "Wkv2", "Wo2")
    wbytes = sum(nbytes(p[k]) for k in weight_keys)
    R = Bb * T
    io = (R * Cin * 4 + R * C * 2 + Bb * T * 4 + R * C * 4
          + (Bb * H * G * T * 4 if with_attn else 0))
    acts = (R * C * 4 * 8 + R * 2 * C * 4 + R * 2 * C * 2
            + Bb * G * C * 4 * 6 + Bb * G * 2 * C * 4)
    need = 2 * wbytes + 2 * io + acts          # weights & IO double-buffered
    return int(min(56 << 20, max(32 << 20, int(1.5 * need))))


def _gp_stage(x, pos, kbias, p, return_attn, out_dtype):
    """x: [B, T, Cin]; pos: [B, T, C] bf16; kbias: [B, 1, T] f32 (additive)."""
    B, T, Cin = x.shape
    C = p["W_mlp"].shape[1]
    H = p["num_heads"]
    G = p["group_tokens"].shape[0]
    Dh = C // H
    scale = 1.0 / math.sqrt(Dh)

    Bb = _choose_block_batch(B, T)
    grid = (B // Bb,)

    kernel = functools.partial(_stage_kernel, num_heads=H, scale=scale,
                               with_attn=return_attn)

    def rep(*shape):  # grid-resident operand (weights): constant block index
        n = len(shape)
        return pl.BlockSpec(shape, lambda b, _n=n: (0,) * _n)

    in_specs = [
        pl.BlockSpec((Bb, T, Cin), lambda b: (b, 0, 0)),   # x
        pl.BlockSpec((Bb, T, C), lambda b: (b, 0, 0)),     # temp_pos (bf16)
        pl.BlockSpec((Bb, 1, T), lambda b: (b, 0, 0)),     # key-padding bias
        rep(Cin, C),            # W_mlp
        rep(1, C),              # gamma
        rep(1, C),              # beta
        rep(G, C),              # group tokens
        rep(C, C),              # Wq1
        rep(C, 2 * C),          # Wkv1 (fused K|V)
        rep(C, C),              # Wo1
        rep(C, 2 * C),          # Wffn1
        rep(2 * C, C),          # Wffn2
        rep(C, C),              # Wq2
        rep(C, 2 * C),          # Wkv2 (fused K|V)
        rep(C, C),              # Wo2
    ]
    out_specs = [pl.BlockSpec((Bb, T, C), lambda b: (b, 0, 0))]
    out_shape = [jax.ShapeDtypeStruct((B, T, C), out_dtype)]
    if return_attn:
        out_specs.append(pl.BlockSpec((Bb, H, G, T), lambda b: (b, 0, 0, 0)))
        out_shape.append(jax.ShapeDtypeStruct((B, H, G, T), jnp.float32))

    vmem_limit = _vmem_limit_bytes(p, Bb, T, Cin, C, G, H, return_attn)

    outs = pl.pallas_call(
        kernel,
        grid=grid,
        in_specs=in_specs,
        out_specs=out_specs,
        out_shape=out_shape,
        compiler_params=pltpu.CompilerParams(
            dimension_semantics=("parallel",),      # shards batch across v7x's 2 TCs
            vmem_limit_bytes=vmem_limit),
    )(x, pos, kbias,
      p["W_mlp"], p["gamma"], p["beta"],
      p["group_tokens"], p["Wq1"], p["Wkv1"], p["Wo1"],
      p["Wffn1"], p["Wffn2"], p["Wq2"], p["Wkv2"], p["Wo2"])

    if return_attn:
        return outs[0], outs[1]
    return outs[0], None


# ------------------------------- parameters ---------------------------------- #

def init_params(key, in_dim, embed_dims, num_token_list, num_heads_list):
    """Weights stored pre-fused (Wk|Wv concatenated) and pre-cast to bf16."""
    def nrm(k, shape, s=0.02):
        return s * jax.random.normal(k, shape, jnp.float32)

    params = []
    prev = in_dim
    for C, G, H in zip(embed_dims, num_token_list, num_heads_list):
        key, *ks = jax.random.split(key, 13)
        wk1, wv1 = nrm(ks[3], (C, C)), nrm(ks[4], (C, C))
        wk2, wv2 = nrm(ks[9], (C, C)), nrm(ks[10], (C, C))
        params.append(dict(
            W_mlp=nrm(ks[0], (prev, C)).astype(jnp.bfloat16),
            gamma=jnp.ones((1, C), jnp.float32),
            beta=jnp.zeros((1, C), jnp.float32),
            group_tokens=nrm(ks[1], (G, C)).astype(jnp.bfloat16),
            Wq1=nrm(ks[2], (C, C)).astype(jnp.bfloat16),
            Wkv1=jnp.concatenate([wk1, wv1], axis=1).astype(jnp.bfloat16),
            Wo1=nrm(ks[5], (C, C)).astype(jnp.bfloat16),
            Wffn1=nrm(ks[6], (C, 2 * C)).astype(jnp.bfloat16),
            Wffn2=nrm(ks[7], (2 * C, C)).astype(jnp.bfloat16),
            Wq2=nrm(ks[8], (C, C)).astype(jnp.bfloat16),
            Wkv2=jnp.concatenate([wk2, wv2], axis=1).astype(jnp.bfloat16),
            Wo2=nrm(ks[11], (C, C)).astype(jnp.bfloat16),
            num_heads=H,
        ))
        prev = C
    return params


# --------------------------------- forward ----------------------------------- #

def exchanger_forward(params, x, temp_pos, temp_mask=None, return_attn=False):
    """x: [B, T, Cin], temp_pos: [T, B, C], temp_mask: [B, T] (True = pad)."""
    B, T, _ = x.shape
    # pos streamed as bf16 (halves its HBM traffic); upcast in-kernel for the f32 add
    pos_bt = jnp.transpose(temp_pos, (1, 0, 2)).astype(jnp.bfloat16)   # [B, T, C]
    if temp_mask is not None:
        kbias = jnp.where(temp_mask, -1e9, 0.0).astype(jnp.float32)[:, None, :]
    else:
        kbias = jnp.zeros((B, 1, T), jnp.float32)

    n_stages = len(params)
    attn_list, feat_list = [], []
    for i, p in enumerate(params):
        # intermediate stages emit bf16 (next stage re-casts to bf16 anyway);
        # the final stage emits f32.
        out_dtype = jnp.float32 if i == n_stages - 1 else jnp.bfloat16
        x, attn = _gp_stage(x, pos_bt, kbias, p, return_attn, out_dtype)
        if return_attn:
            attn_list.append(attn)
            feat_list.append(x.astype(jnp.float32))

    if return_attn:
        return x, jnp.stack(attn_list, axis=1), jnp.stack(feat_list, axis=1)
    return x, None, None


# ----------------------------------- main ------------------------------------ #

if __name__ == "__main__":
    key = jax.random.PRNGKey(0)
    B, T = 2, 8
    in_channels = 16
    embed_dims = [32, 32]
    num_token_list = [4, 4]
    num_heads_list = [2, 2]
    pe_dim = 32

    k1, k2, k3 = jax.random.split(key, 3)
    x = jax.random.normal(k1, (B, T, in_channels), jnp.float32)
    temp_pos = 0.02 * jax.random.normal(k2, (T, B, pe_dim), jnp.float32)
    temp_mask = jnp.zeros((B, T), jnp.bool_).at[1, T - 1].set(True)

    params = init_params(k3, in_channels, embed_dims, num_token_list, num_heads_list)

    out, _, _ = exchanger_forward(params, x, temp_pos, temp_mask)
    out = jax.block_until_ready(out)
    assert out.shape == (B, T, embed_dims[-1])
    assert out.dtype == jnp.float32
    assert bool(jnp.all(jnp.isfinite(out)))
    print("KERNEL_OK")
</pallas_src>

<mosaic_0001>
module attributes {stable_mosaic.version = 11 : i64} {
  func.func @_stage_kernel(%arg0: i32, %arg1: memref<1x8x16xf32, #tpu.memory_space<vmem>>, %arg2: memref<1x8x32xbf16, #tpu.memory_space<vmem>>, %arg3: memref<1x1x8xf32, #tpu.memory_space<vmem>>, %arg4: memref<16x32xbf16, #tpu.memory_space<vmem>>, %arg5: memref<1x32xf32, #tpu.memory_space<vmem>>, %arg6: memref<1x32xf32, #tpu.memory_space<vmem>>, %arg7: memref<4x32xbf16, #tpu.memory_space<vmem>>, %arg8: memref<32x32xbf16, #tpu.memory_space<vmem>>, %arg9: memref<32x64xbf16, #tpu.memory_space<vmem>>, %arg10: memref<32x32xbf16, #tpu.memory_space<vmem>>, %arg11: memref<32x64xbf16, #tpu.memory_space<vmem>>, %arg12: memref<64x32xbf16, #tpu.memory_space<vmem>>, %arg13: memref<32x32xbf16, #tpu.memory_space<vmem>>, %arg14: memref<32x64xbf16, #tpu.memory_space<vmem>>, %arg15: memref<32x32xbf16, #tpu.memory_space<vmem>>, %arg16: memref<1x8x32xbf16, #tpu.memory_space<vmem>>) attributes {dimension_semantics = [#tpu.dimension_semantics<parallel>], iteration_bounds = array<i64: 2>, scalar_prefetch = 0 : i64, scratch_operands = 0 : i64, tpu.core_type = #tpu.core_type<tc>, window_params = [{transform_indices = @transform_0, window_bounds = array<i64: 1, 8, 16>}, {transform_indices = @transform_1, window_bounds = array<i64: 1, 8, 32>}, {transform_indices = @transform_2, window_bounds = array<i64: 1, 1, 8>}, {pipeline_mode = #tpu.pipeline_mode<synchronous>, transform_indices = @transform_3, window_bounds = array<i64: 16, 32>}, {pipeline_mode = #tpu.pipeline_mode<synchronous>, transform_indices = @transform_4, window_bounds = array<i64: 1, 32>}, {pipeline_mode = #tpu.pipeline_mode<synchronous>, transform_indices = @transform_5, window_bounds = array<i64: 1, 32>}, {pipeline_mode = #tpu.pipeline_mode<synchronous>, transform_indices = @transform_6, window_bounds = array<i64: 4, 32>}, {pipeline_mode = #tpu.pipeline_mode<synchronous>, transform_indices = @transform_7, window_bounds = array<i64: 32, 32>}, {pipeline_mode = #tpu.pipeline_mode<synchronous>, transform_indices = @transform_8, window_bounds = array<i64: 32, 64>}, {pipeline_mode = #tpu.pipeline_mode<synchronous>, transform_indices = @transform_9, window_bounds = array<i64: 32, 32>}, {pipeline_mode = #tpu.pipeline_mode<synchronous>, transform_indices = @transform_10, window_bounds = array<i64: 32, 64>}, {pipeline_mode = #tpu.pipeline_mode<synchronous>, transform_indices = @transform_11, window_bounds = array<i64: 64, 32>}, {pipeline_mode = #tpu.pipeline_mode<synchronous>, transform_indices = @transform_12, window_bounds = array<i64: 32, 32>}, {pipeline_mode = #tpu.pipeline_mode<synchronous>, transform_indices = @transform_13, window_bounds = array<i64: 32, 64>}, {pipeline_mode = #tpu.pipeline_mode<synchronous>, transform_indices = @transform_14, window_bounds = array<i64: 32, 32>}, {transform_indices = @transform_15, window_bounds = array<i64: 1, 8, 32>}]} {
    %c0 = arith.constant 0 : index
    %c0_0 = arith.constant 0 : index
    %c0_1 = arith.constant 0 : index
    %0 = vector.load %arg1[%c0, %c0_0, %c0_1] : memref<1x8x16xf32, #tpu.memory_space<vmem>>, vector<1x8x16xf32>
    %1 = vector.shape_cast %0 : vector<1x8x16xf32> to vector<8x16xf32>
    %2 = arith.truncf %1 : vector<8x16xf32> to vector<8x16xbf16>
    %c0_2 = arith.constant 0 : index
    %c0_3 = arith.constant 0 : index
    %3 = vector.load %arg4[%c0_2, %c0_3] : memref<16x32xbf16, #tpu.memory_space<vmem>>, vector<16x32xbf16>
    %cst = arith.constant dense<0.000000e+00> : vector<8x32xf32>
    %4 = tpu.matmul %2, %3, %cst {dimension_numbers = #tpu.dot_dimension_numbers<[1], [0], [0], [1], [0, 0, 1, 1], [], []>} : vector<8x16xbf16>, vector<16x32xbf16>, vector<8x32xf32> -> vector<8x32xf32>
    %cst_4 = arith.constant dense<0.000000e+00> : vector<8xf32>
    %5 = vector.multi_reduction <add>, %4, %cst_4 [1] : vector<8x32xf32> to vector<8xf32>
    %6 = vector.shape_cast %5 : vector<8xf32> to vector<8x1xf32>
    %cst_5 = arith.constant 3.200000e+01 : f32
    %7 = vector.broadcast %cst_5 : f32 to vector<8x1xf32>
    %8 = arith.divf %6, %7 : vector<8x1xf32>
    %9 = vector.broadcast %8 : vector<8x1xf32> to vector<8x32xf32>
    %10 = arith.subf %4, %9 : vector<8x32xf32>
    %11 = arith.mulf %10, %10 : vector<8x32xf32>
    %cst_6 = arith.constant dense<0.000000e+00> : vector<8xf32>
    %12 = vector.multi_reduction <add>, %11, %cst_6 [1] : vector<8x32xf32> to vector<8xf32>
    %13 = vector.shape_cast %12 : vector<8xf32> to vector<8x1xf32>
    %cst_7 = arith.constant 3.200000e+01 : f32
    %14 = vector.broadcast %cst_7 : f32 to vector<8x1xf32>
    %15 = arith.divf %13, %14 : vector<8x1xf32>
    %16 = vector.broadcast %8 : vector<8x1xf32> to vector<8x32xf32>
    %17 = arith.subf %4, %16 : vector<8x32xf32>
    %cst_8 = arith.constant 9.99999974E-6 : f32
    %18 = vector.broadcast %cst_8 : f32 to vector<8x1xf32>
    %19 = arith.addf %15, %18 : vector<8x1xf32>
    %20 = math.rsqrt %19 : vector<8x1xf32>
    %21 = vector.broadcast %20 : vector<8x1xf32> to vector<8x32xf32>
    %22 = arith.mulf %17, %21 : vector<8x32xf32>
    %c0_9 = arith.constant 0 : index
    %c0_10 = arith.constant 0 : index
    %23 = vector.load %arg5[%c0_9, %c0_10] : memref<1x32xf32, #tpu.memory_space<vmem>>, vector<1x32xf32>
    %24 = vector.broadcast %23 : vector<1x32xf32> to vector<8x32xf32>
    %25 = arith.mulf %22, %24 : vector<8x32xf32>
    %c0_11 = arith.constant 0 : index
    %c0_12 = arith.constant 0 : index
    %26 = vector.load %arg6[%c0_11, %c0_12] : memref<1x32xf32, #tpu.memory_space<vmem>>, vector<1x32xf32>
    %27 = vector.broadcast %26 : vector<1x32xf32> to vector<8x32xf32>
    %28 = arith.addf %25, %27 : vector<8x32xf32>
    %29 = arith.mulf %28, %28 : vector<8x32xf32>
    %30 = arith.mulf %28, %29 : vector<8x32xf32>
    %cst_13 = arith.constant 4.471500e-02 : f32
    %31 = vector.broadcast %cst_13 : f32 to vector<8x32xf32>
    %32 = arith.mulf %31, %30 : vector<8x32xf32>
    %33 = arith.addf %28, %32 : vector<8x32xf32>
    %cst_14 = arith.constant 0.797884583 : f32
    %34 = vector.broadcast %cst_14 : f32 to vector<8x32xf32>
    %35 = arith.mulf %34, %33 : vector<8x32xf32>
    %36 = math.tanh %35 : vector<8x32xf32>
    %cst_15 = arith.constant 1.000000e+00 : f32
    %37 = vector.broadcast %cst_15 : f32 to vector<8x32xf32>
    %38 = arith.addf %37, %36 : vector<8x32xf32>
    %cst_16 = arith.constant 5.000000e-01 : f32
    %39 = vector.broadcast %cst_16 : f32 to vector<8x32xf32>
    %40 = arith.mulf %39, %38 : vector<8x32xf32>
    %41 = arith.mulf %28, %40 : vector<8x32xf32>
    %c0_17 = arith.constant 0 : index
    %c0_18 = arith.constant 0 : index
    %c0_19 = arith.constant 0 : index
    %42 = vector.load %arg2[%c0_17, %c0_18, %c0_19] : memref<1x8x32xbf16, #tpu.memory_space<vmem>>, vector<1x8x32xbf16>
    %43 = vector.shape_cast %42 : vector<1x8x32xbf16> to vector<8x32xbf16>
    %44 = arith.extf %43 : vector<8x32xbf16> to vector<8x32xf32>
    %45 = arith.addf %41, %44 : vector<8x32xf32>
    %46 = arith.truncf %45 : vector<8x32xf32> to vector<8x32xbf16>
    %c0_20 = arith.constant 0 : index
    %c0_21 = arith.constant 0 : index
    %47 = vector.load %arg9[%c0_20, %c0_21] : memref<32x64xbf16, #tpu.memory_space<vmem>>, vector<32x64xbf16>
    %cst_22 = arith.constant dense<0.000000e+00> : vector<8x64xf32>
    %48 = tpu.matmul %46, %47, %cst_22 {dimension_numbers = #tpu.dot_dimension_numbers<[1], [0], [0], [1], [0, 0, 1, 1], [], []>} : vector<8x32xbf16>, vector<32x64xbf16>, vector<8x64xf32> -> vector<8x64xf32>
    %49 = arith.truncf %48 : vector<8x64xf32> to vector<8x64xbf16>
    %c0_23 = arith.constant 0 : index
    %c0_24 = arith.constant 0 : index
    %50 = vector.load %arg13[%c0_23, %c0_24] : memref<32x32xbf16, #tpu.memory_space<vmem>>, vector<32x32xbf16>
    %cst_25 = arith.constant dense<0.000000e+00> : vector<8x32xf32>
    %51 = tpu.matmul %46, %50, %cst_25 {dimension_numbers = #tpu.dot_dimension_numbers<[1], [0], [0], [1], [0, 0, 1, 1], [], []>} : vector<8x32xbf16>, vector<32x32xbf16>, vector<8x32xf32> -> vector<8x32xf32>
    %52 = arith.truncf %51 : vector<8x32xf32> to vector<8x32xbf16>
    %c0_26 = arith.constant 0 : index
    %c0_27 = arith.constant 0 : index
    %53 = vector.load %arg7[%c0_26, %c0_27] : memref<4x32xbf16, #tpu.memory_space<vmem>>, vector<4x32xbf16>
    %c0_28 = arith.constant 0 : index
    %c0_29 = arith.constant 0 : index
    %54 = vector.load %arg8[%c0_28, %c0_29] : memref<32x32xbf16, #tpu.memory_space<vmem>>, vector<32x32xbf16>
    %cst_30 = arith.constant dense<0.000000e+00> : vector<4x32xf32>
    %55 = tpu.matmul %53, %54, %cst_30 {dimension_numbers = #tpu.dot_dimension_numbers<[1], [0], [0], [1], [0, 0, 1, 1], [], []>} : vector<4x32xbf16>, vector<32x32xbf16>, vector<4x32xf32> -> vector<4x32xf32>
    %56 = arith.truncf %55 : vector<4x32xf32> to vector<4x32xbf16>
    %c0_31 = arith.constant 0 : index
    %c0_32 = arith.constant 0 : index
    %c0_33 = arith.constant 0 : index
    %57 = vector.load %arg3[%c0_31, %c0_32, %c0_33] : memref<1x1x8xf32, #tpu.memory_space<vmem>>, vector<1x1x8xf32>
    %58 = vector.shape_cast %57 : vector<1x1x8xf32> to vector<1x8xf32>
    %59 = vector.shape_cast %58 : vector<1x8xf32> to vector<1x8xf32>
    %60 = vector.broadcast %59 : vector<1x8xf32> to vector<4x8xf32>
    %61 = vector.extract_strided_slice %56 {offsets = [0, 0], sizes = [4, 16], strides = [1, 1]} : vector<4x32xbf16> to vector<4x16xbf16>
    %62 = vector.extract_strided_slice %49 {offsets = [0, 0], sizes = [8, 16], strides = [1, 1]} : vector<8x64xbf16> to vector<8x16xbf16>
    %63 = vector.extract_strided_slice %49 {offsets = [0, 32], sizes = [8, 16], strides = [1, 1]} : vector<8x64xbf16> to vector<8x16xbf16>
    %cst_34 = arith.constant dense<0.000000e+00> : vector<4x8xf32>
    %64 = tpu.matmul %61, %62, %cst_34 {dimension_numbers = #tpu.dot_dimension_numbers<[1], [1], [0], [0], [0, 0, 1, 0], [], []>} : vector<4x16xbf16>, vector<8x16xbf16>, vector<4x8xf32> -> vector<4x8xf32>
    %cst_35 = arith.constant 2.500000e-01 : f32
    %65 = vector.broadcast %cst_35 : f32 to vector<4x8xf32>
    %66 = arith.mulf %64, %65 : vector<4x8xf32>
    %67 = arith.addf %66, %60 : vector<4x8xf32>
    %cst_36 = arith.constant dense<0xFF800000> : vector<4xf32>
    %68 = vector.multi_reduction <maximumf>, %67, %cst_36 [1] : vector<4x8xf32> to vector<4xf32>
    %69 = vector.shape_cast %68 : vector<4xf32> to vector<4x1xf32>
    %70 = vector.broadcast %69 : vector<4x1xf32> to vector<4x8xf32>
    %71 = arith.subf %67, %70 : vector<4x8xf32>
    %72 = math.exp %71 : vector<4x8xf32>
    %cst_37 = arith.constant dense<0.000000e+00> : vector<4xf32>
    %73 = vector.multi_reduction <add>, %72, %cst_37 [1] : vector<4x8xf32> to vector<4xf32>
    %74 = vector.shape_cast %73 : vector<4xf32> to vector<4x1xf32>
    %75 = tpu.reciprocal %74 {approx = true} : vector<4x1xf32> -> vector<4x1xf32>
    %76 = vector.broadcast %75 : vector<4x1xf32> to vector<4x8xf32>
    %77 = arith.mulf %72, %76 : vector<4x8xf32>
    %78 = arith.truncf %77 : vector<4x8xf32> to vector<4x8xbf16>
    %cst_38 = arith.constant dense<0.000000e+00> : vector<4x16xf32>
    %79 = tpu.matmul %78, %63, %cst_38 {dimension_numbers = #tpu.dot_dimension_numbers<[1], [0], [0], [1], [0, 0, 1, 1], [], []>} : vector<4x8xbf16>, vector<8x16xbf16>, vector<4x16xf32> -> vector<4x16xf32>
    %80 = vector.extract_strided_slice %56 {offsets = [0, 16], sizes = [4, 16], strides = [1, 1]} : vector<4x32xbf16> to vector<4x16xbf16>
    %81 = vector.extract_strided_slice %49 {offsets = [0, 16], sizes = [8, 16], strides = [1, 1]} : vector<8x64xbf16> to vector<8x16xbf16>
    %82 = vector.extract_strided_slice %49 {offsets = [0, 48], sizes = [8, 16], strides = [1, 1]} : vector<8x64xbf16> to vector<8x16xbf16>
    %cst_39 = arith.constant dense<0.000000e+00> : vector<4x8xf32>
    %83 = tpu.matmul %80, %81, %cst_39 {dimension_numbers = #tpu.dot_dimension_numbers<[1], [1], [0], [0], [0, 0, 1, 0], [], []>} : vector<4x16xbf16>, vector<8x16xbf16>, vector<4x8xf32> -> vector<4x8xf32>
    %cst_40 = arith.constant 2.500000e-01 : f32
    %84 = vector.broadcast %cst_40 : f32 to vector<4x8xf32>
    %85 = arith.mulf %83, %84 : vector<4x8xf32>
    %86 = arith.addf %85, %60 : vector<4x8xf32>
    %cst_41 = arith.constant dense<0xFF800000> : vector<4xf32>
    %87 = vector.multi_reduction <maximumf>, %86, %cst_41 [1] : vector<4x8xf32> to vector<4xf32>
    %88 = vector.shape_cast %87 : vector<4xf32> to vector<4x1xf32>
    %89 = vector.broadcast %88 : vector<4x1xf32> to vector<4x8xf32>
    %90 = arith.subf %86, %89 : vector<4x8xf32>
    %91 = math.exp %90 : vector<4x8xf32>
    %cst_42 = arith.constant dense<0.000000e+00> : vector<4xf32>
    %92 = vector.multi_reduction <add>, %91, %cst_42 [1] : vector<4x8xf32> to vector<4xf32>
    %93 = vector.shape_cast %92 : vector<4xf32> to vector<4x1xf32>
    %94 = tpu.reciprocal %93 {approx = true} : vector<4x1xf32> -> vector<4x1xf32>
    %95 = vector.broadcast %94 : vector<4x1xf32> to vector<4x8xf32>
    %96 = arith.mulf %91, %95 : vector<4x8xf32>
    %97 = arith.truncf %96 : vector<4x8xf32> to vector<4x8xbf16>
    %cst_43 = arith.constant dense<0.000000e+00> : vector<4x16xf32>
    %98 = tpu.matmul %97, %82, %cst_43 {dimension_numbers = #tpu.dot_dimension_numbers<[1], [0], [0], [1], [0, 0, 1, 1], [], []>} : vector<4x8xbf16>, vector<8x16xbf16>, vector<4x16xf32> -> vector<4x16xf32>
    %99 = tpu.concatenate %79, %98 in 1 : vector<4x16xf32>, vector<4x16xf32> -> vector<4x32xf32>
    %100 = arith.truncf %99 : vector<4x32xf32> to vector<4x32xbf16>
    %c0_44 = arith.constant 0 : index
    %c0_45 = arith.constant 0 : index
    %101 = vector.load %arg10[%c0_44, %c0_45] : memref<32x32xbf16, #tpu.memory_space<vmem>>, vector<32x32xbf16>
    %cst_46 = arith.constant dense<0.000000e+00> : vector<4x32xf32>
    %102 = tpu.matmul %100, %101, %cst_46 {dimension_numbers = #tpu.dot_dimension_numbers<[1], [0], [0], [1], [0, 0, 1, 1], [], []>} : vector<4x32xbf16>, vector<32x32xbf16>, vector<4x32xf32> -> vector<4x32xf32>
    %103 = arith.truncf %102 : vector<4x32xf32> to vector<4x32xbf16>
    %c0_47 = arith.constant 0 : index
    %c0_48 = arith.constant 0 : index
    %104 = vector.load %arg11[%c0_47, %c0_48] : memref<32x64xbf16, #tpu.memory_space<vmem>>, vector<32x64xbf16>
    %cst_49 = arith.constant dense<0.000000e+00> : vector<4x64xf32>
    %105 = tpu.matmul %103, %104, %cst_49 {dimension_numbers = #tpu.dot_dimension_numbers<[1], [0], [0], [1], [0, 0, 1, 1], [], []>} : vector<4x32xbf16>, vector<32x64xbf16>, vector<4x64xf32> -> vector<4x64xf32>
    %106 = arith.mulf %105, %105 : vector<4x64xf32>
    %107 = arith.mulf %105, %106 : vector<4x64xf32>
    %cst_50 = arith.constant 4.471500e-02 : f32
    %108 = vector.broadcast %cst_50 : f32 to vector<4x64xf32>
    %109 = arith.mulf %108, %107 : vector<4x64xf32>
    %110 = arith.addf %105, %109 : vector<4x64xf32>
    %cst_51 = arith.constant 0.797884583 : f32
    %111 = vector.broadcast %cst_51 : f32 to vector<4x64xf32>
    %112 = arith.mulf %111, %110 : vector<4x64xf32>
    %113 = math.tanh %112 : vector<4x64xf32>
    %cst_52 = arith.constant 1.000000e+00 : f32
    %114 = vector.broadcast %cst_52 : f32 to vector<4x64xf32>
    %115 = arith.addf %114, %113 : vector<4x64xf32>
    %cst_53 = arith.constant 5.000000e-01 : f32
    %116 = vector.broadcast %cst_53 : f32 to vector<4x64xf32>
    %117 = arith.mulf %116, %115 : vector<4x64xf32>
    %118 = arith.mulf %105, %117 : vector<4x64xf32>
    %119 = arith.truncf %118 : vector<4x64xf32> to vector<4x64xbf16>
    %c0_54 = arith.constant 0 : index
    %c0_55 = arith.constant 0 : index
    %120 = vector.load %arg12[%c0_54, %c0_55] : memref<64x32xbf16, #tpu.memory_space<vmem>>, vector<64x32xbf16>
    %cst_56 = arith.constant dense<0.000000e+00> : vector<4x32xf32>
    %121 = tpu.matmul %119, %120, %cst_56 {dimension_numbers = #tpu.dot_dimension_numbers<[1], [0], [0], [1], [0, 0, 1, 1], [], []>} : vector<4x64xbf16>, vector<64x32xbf16>, vector<4x32xf32> -> vector<4x32xf32>
    %122 = arith.addf %102, %121 : vector<4x32xf32>
    %123 = arith.truncf %122 : vector<4x32xf32> to vector<4x32xbf16>
    %c0_57 = arith.constant 0 : index
    %c0_58 = arith.constant 0 : index
    %124 = vector.load %arg14[%c0_57, %c0_58] : memref<32x64xbf16, #tpu.memory_space<vmem>>, vector<32x64xbf16>
    %cst_59 = arith.constant dense<0.000000e+00> : vector<4x64xf32>
    %125 = tpu.matmul %123, %124, %cst_59 {dimension_numbers = #tpu.dot_dimension_numbers<[1], [0], [0], [1], [0, 0, 1, 1], [], []>} : vector<4x32xbf16>, vector<32x64xbf16>, vector<4x64xf32> -> vector<4x64xf32>
    %126 = arith.truncf %125 : vector<4x64xf32> to vector<4x64xbf16>
    %127 = vector.extract_strided_slice %52 {offsets = [0, 0], sizes = [8, 16], strides = [1, 1]} : vector<8x32xbf16> to vector<8x16xbf16>
    %128 = vector.extract_strided_slice %126 {offsets = [0, 0], sizes = [4, 16], strides = [1, 1]} : vector<4x64xbf16> to vector<4x16xbf16>
    %129 = vector.extract_strided_slice %126 {offsets = [0, 32], sizes = [4, 16], strides = [1, 1]} : vector<4x64xbf16> to vector<4x16xbf16>
    %cst_60 = arith.constant dense<0.000000e+00> : vector<8x4xf32>
    %130 = tpu.matmul %127, %128, %cst_60 {dimension_numbers = #tpu.dot_dimension_numbers<[1], [1], [0], [0], [0, 0, 1, 0], [], []>} : vector<8x16xbf16>, vector<4x16xbf16>, vector<8x4xf32> -> vector<8x4xf32>
    %cst_61 = arith.constant 2.500000e-01 : f32
    %131 = vector.broadcast %cst_61 : f32 to vector<8x4xf32>
    %132 = arith.mulf %130, %131 : vector<8x4xf32>
    %cst_62 = arith.constant dense<0xFF800000> : vector<8xf32>
    %133 = vector.multi_reduction <maximumf>, %132, %cst_62 [1] : vector<8x4xf32> to vector<8xf32>
    %134 = vector.shape_cast %133 : vector<8xf32> to vector<8x1xf32>
    %135 = vector.broadcast %134 : vector<8x1xf32> to vector<8x4xf32>
    %136 = arith.subf %132, %135 : vector<8x4xf32>
    %137 = math.exp %136 : vector<8x4xf32>
    %cst_63 = arith.constant dense<0.000000e+00> : vector<8xf32>
    %138 = vector.multi_reduction <add>, %137, %cst_63 [1] : vector<8x4xf32> to vector<8xf32>
    %139 = vector.shape_cast %138 : vector<8xf32> to vector<8x1xf32>
    %140 = tpu.reciprocal %139 {approx = true} : vector<8x1xf32> -> vector<8x1xf32>
    %141 = vector.broadcast %140 : vector<8x1xf32> to vector<8x4xf32>
    %142 = arith.mulf %137, %141 : vector<8x4xf32>
    %143 = arith.truncf %142 : vector<8x4xf32> to vector<8x4xbf16>
    %cst_64 = arith.constant dense<0.000000e+00> : vector<8x16xf32>
    %144 = tpu.matmul %143, %129, %cst_64 {dimension_numbers = #tpu.dot_dimension_numbers<[1], [0], [0], [1], [0, 0, 1, 1], [], []>} : vector<8x4xbf16>, vector<4x16xbf16>, vector<8x16xf32> -> vector<8x16xf32>
    %145 = vector.extract_strided_slice %52 {offsets = [0, 16], sizes = [8, 16], strides = [1, 1]} : vector<8x32xbf16> to vector<8x16xbf16>
    %146 = vector.extract_strided_slice %126 {offsets = [0, 16], sizes = [4, 16], strides = [1, 1]} : vector<4x64xbf16> to vector<4x16xbf16>
    %147 = vector.extract_strided_slice %126 {offsets = [0, 48], sizes = [4, 16], strides = [1, 1]} : vector<4x64xbf16> to vector<4x16xbf16>
    %cst_65 = arith.constant dense<0.000000e+00> : vector<8x4xf32>
    %148 = tpu.matmul %145, %146, %cst_65 {dimension_numbers = #tpu.dot_dimension_numbers<[1], [1], [0], [0], [0, 0, 1, 0], [], []>} : vector<8x16xbf16>, vector<4x16xbf16>, vector<8x4xf32> -> vector<8x4xf32>
    %cst_66 = arith.constant 2.500000e-01 : f32
    %149 = vector.broadcast %cst_66 : f32 to vector<8x4xf32>
    %150 = arith.mulf %148, %149 : vector<8x4xf32>
    %cst_67 = arith.constant dense<0xFF800000> : vector<8xf32>
    %151 = vector.multi_reduction <maximumf>, %150, %cst_67 [1] : vector<8x4xf32> to vector<8xf32>
    %152 = vector.shape_cast %151 : vector<8xf32> to vector<8x1xf32>
    %153 = vector.broadcast %152 : vector<8x1xf32> to vector<8x4xf32>
    %154 = arith.subf %150, %153 : vector<8x4xf32>
    %155 = math.exp %154 : vector<8x4xf32>
    %cst_68 = arith.constant dense<0.000000e+00> : vector<8xf32>
    %156 = vector.multi_reduction <add>, %155, %cst_68 [1] : vector<8x4xf32> to vector<8xf32>
    %157 = vector.shape_cast %156 : vector<8xf32> to vector<8x1xf32>
    %158 = tpu.reciprocal %157 {approx = true} : vector<8x1xf32> -> vector<8x1xf32>
    %159 = vector.broadcast %158 : vector<8x1xf32> to vector<8x4xf32>
    %160 = arith.mulf %155, %159 : vector<8x4xf32>
    %161 = arith.truncf %160 : vector<8x4xf32> to vector<8x4xbf16>
    %cst_69 = arith.constant dense<0.000000e+00> : vector<8x16xf32>
    %162 = tpu.matmul %161, %147, %cst_69 {dimension_numbers = #tpu.dot_dimension_numbers<[1], [0], [0], [1], [0, 0, 1, 1], [], []>} : vector<8x4xbf16>, vector<4x16xbf16>, vector<8x16xf32> -> vector<8x16xf32>
    %163 = tpu.concatenate %144, %162 in 1 : vector<8x16xf32>, vector<8x16xf32> -> vector<8x32xf32>
    %164 = arith.truncf %163 : vector<8x32xf32> to vector<8x32xbf16>
    %c0_70 = arith.constant 0 : index
    %c0_71 = arith.constant 0 : index
    %165 = vector.load %arg15[%c0_70, %c0_71] : memref<32x32xbf16, #tpu.memory_space<vmem>>, vector<32x32xbf16>
    %cst_72 = arith.constant dense<0.000000e+00> : vector<8x32xf32>
    %166 = tpu.matmul %164, %165, %cst_72 {dimension_numbers = #tpu.dot_dimension_numbers<[1], [0], [0], [1], [0, 0, 1, 1], [], []>} : vector<8x32xbf16>, vector<32x32xbf16>, vector<8x32xf32> -> vector<8x32xf32>
    %167 = arith.addf %41, %166 : vector<8x32xf32>
    %168 = vector.shape_cast %167 : vector<8x32xf32> to vector<1x8x32xf32>
    %169 = arith.truncf %168 : vector<1x8x32xf32> to vector<1x8x32xbf16>
    %c0_73 = arith.constant 0 : index
    %c0_74 = arith.constant 0 : index
    %c0_75 = arith.constant 0 : index
    %170 = vector.load %arg16[%c0_73, %c0_74, %c0_75] : memref<1x8x32xbf16, #tpu.memory_space<vmem>>, vector<1x8x32xbf16>
    tpu.vector_store %arg16[%c0_73, %c0_74, %c0_75], %169 {strides = array<i32>} : memref<1x8x32xbf16, #tpu.memory_space<vmem>>, vector<1x8x32xbf16>,
    return
  }
  func.func @transform_0(%arg0: i32) -> (i32, i32, i32) {
    %c0_i32 = arith.constant 0 : i32
    %c0_i32_0 = arith.constant 0 : i32
    %c0_i32_1 = arith.constant 0 : i32
    return %arg0, %c0_i32, %c0_i32_0 : i32, i32, i32
  }
  func.func @transform_1(%arg0: i32) -> (i32, i32, i32) {
    %c0_i32 = arith.constant 0 : i32
    %c0_i32_0 = arith.constant 0 : i32
    %c0_i32_1 = arith.constant 0 : i32
    return %arg0, %c0_i32, %c0_i32_0 : i32, i32, i32
  }
  func.func @transform_2(%arg0: i32) -> (i32, i32, i32) {
    %c0_i32 = arith.constant 0 : i32
    %c0_i32_0 = arith.constant 0 : i32
    %c0_i32_1 = arith.constant 0 : i32
    return %arg0, %c0_i32, %c0_i32_0 : i32, i32, i32
  }
  func.func @transform_3(%arg0: i32) -> (i32, i32) {
    %c0_i32 = arith.constant 0 : i32
    %c0_i32_0 = arith.constant 0 : i32
    %c0_i32_1 = arith.constant 0 : i32
    return %c0_i32, %c0_i32_0 : i32, i32
  }
  func.func @transform_4(%arg0: i32) -> (i32, i32) {
    %c0_i32 = arith.constant 0 : i32
    %c0_i32_0 = arith.constant 0 : i32
    %c0_i32_1 = arith.constant 0 : i32
    return %c0_i32, %c0_i32_0 : i32, i32
  }
  func.func @transform_5(%arg0: i32) -> (i32, i32) {
    %c0_i32 = arith.constant 0 : i32
    %c0_i32_0 = arith.constant 0 : i32
    %c0_i32_1 = arith.constant 0 : i32
    return %c0_i32, %c0_i32_0 : i32, i32
  }
  func.func @transform_6(%arg0: i32) -> (i32, i32) {
    %c0_i32 = arith.constant 0 : i32
    %c0_i32_0 = arith.constant 0 : i32
    %c0_i32_1 = arith.constant 0 : i32
    return %c0_i32, %c0_i32_0 : i32, i32
  }
  func.func @transform_7(%arg0: i32) -> (i32, i32) {
    %c0_i32 = arith.constant 0 : i32
    %c0_i32_0 = arith.constant 0 : i32
    %c0_i32_1 = arith.constant 0 : i32
    return %c0_i32, %c0_i32_0 : i32, i32
  }
  func.func @transform_8(%arg0: i32) -> (i32, i32) {
    %c0_i32 = arith.constant 0 : i32
    %c0_i32_0 = arith.constant 0 : i32
    %c0_i32_1 = arith.constant 0 : i32
    return %c0_i32, %c0_i32_0 : i32, i32
  }
  func.func @transform_9(%arg0: i32) -> (i32, i32) {
    %c0_i32 = arith.constant 0 : i32
    %c0_i32_0 = arith.constant 0 : i32
    %c0_i32_1 = arith.constant 0 : i32
    return %c0_i32, %c0_i32_0 : i32, i32
  }
  func.func @transform_10(%arg0: i32) -> (i32, i32) {
    %c0_i32 = arith.constant 0 : i32
    %c0_i32_0 = arith.constant 0 : i32
    %c0_i32_1 = arith.constant 0 : i32
    return %c0_i32, %c0_i32_0 : i32, i32
  }
  func.func @transform_11(%arg0: i32) -> (i32, i32) {
    %c0_i32 = arith.constant 0 : i32
    %c0_i32_0 = arith.constant 0 : i32
    %c0_i32_1 = arith.constant 0 : i32
    return %c0_i32, %c0_i32_0 : i32, i32
  }
  func.func @transform_12(%arg0: i32) -> (i32, i32) {
    %c0_i32 = arith.constant 0 : i32
    %c0_i32_0 = arith.constant 0 : i32
    %c0_i32_1 = arith.constant 0 : i32
    return %c0_i32, %c0_i32_0 : i32, i32
  }
  func.func @transform_13(%arg0: i32) -> (i32, i32) {
    %c0_i32 = arith.constant 0 : i32
    %c0_i32_0 = arith.constant 0 : i32
    %c0_i32_1 = arith.constant 0 : i32
    return %c0_i32, %c0_i32_0 : i32, i32
  }
  func.func @transform_14(%arg0: i32) -> (i32, i32) {
    %c0_i32 = arith.constant 0 : i32
    %c0_i32_0 = arith.constant 0 : i32
    %c0_i32_1 = arith.constant 0 : i32
    return %c0_i32, %c0_i32_0 : i32, i32
  }
  func.func @transform_15(%arg0: i32) -> (i32, i32, i32) {
    %c0_i32 = arith.constant 0 : i32
    %c0_i32_0 = arith.constant 0 : i32
    %c0_i32_1 = arith.constant 0 : i32
    return %arg0, %c0_i32, %c0_i32_0 : i32, i32, i32
  }
}

</mosaic_0001>

<llo_original>
// kernel: tpu_custom_call.1
$region0: #{tpu_custom_call.1}
  #allocation0 [shape = 'u32[]', space=smem, size = 0x4, offset = 0x4, fixed_abs, tag = 'smem constant byte address 0x4 - core index']
  #allocation1 [shape = 'u32[144,128]{1,0:T(1,128)}', space=vmem, size = 0x12000, scoped, tag = 'internal scratch']
  %s0 = inlined_call_operand.vmem [shape: f32[2,8,16], index: 0, kind: input, shape index: {}]
  %s1 = inlined_call_operand.hbm [shape: bf16[2,8,32], index: 1, kind: input, shape index: {}]
  %s2 = inlined_call_operand.hbm [shape: f32[2,1,8], index: 2, kind: input, shape index: {}]
  %s3 = inlined_call_operand.hbm [shape: bf16[16,32], index: 3, kind: input, shape index: {}]
  %s4 = inlined_call_operand.vmem [shape: f32[1,32], index: 4, kind: input, shape index: {}]
  %s5 = inlined_call_operand.hbm [shape: f32[1,32], index: 5, kind: input, shape index: {}]
  %s6 = inlined_call_operand.hbm [shape: bf16[4,32], index: 6, kind: input, shape index: {}]
  %s7 = inlined_call_operand.vmem [shape: bf16[32,32], index: 7, kind: input, shape index: {}]
  %s8 = inlined_call_operand.vmem [shape: bf16[32,64], index: 8, kind: input, shape index: {}]
  %s9 = inlined_call_operand.vmem [shape: bf16[32,32], index: 9, kind: input, shape index: {}]
  %s10 = inlined_call_operand.hbm [shape: bf16[32,64], index: 10, kind: input, shape index: {}]
  %s11 = inlined_call_operand.vmem [shape: bf16[64,32], index: 11, kind: input, shape index: {}]
  %s12 = inlined_call_operand.hbm [shape: bf16[32,32], index: 12, kind: input, shape index: {}]
  %s13 = inlined_call_operand.vmem [shape: bf16[32,64], index: 13, kind: input, shape index: {}]
  %s14 = inlined_call_operand.hbm [shape: bf16[32,32], index: 14, kind: input, shape index: {}]
  %s15 = inlined_call_operand.hbm [shape: bf16[2,8,32], index: 15, kind: output, shape index: {}]
  %s16 = sld [smem:[#allocation0]]
  $region125: #{tpu_custom_call.1} parent=0
    _
  %s18 = ssub.s32 1, %s16
  %s19 = scalar_select 0, %s18, %s16
  $region1: #{tpu_custom_call.1} parent=0
    #allocation2 [shape = 'u8[4096]{0}', space=vmem, size = 0x1000, scoped, tag = 'input window, operand 1']
    #allocation3 [shape = 's32[2]{0}', space=sflag, size = 0x8, scoped, tag = 'scoped memory for tpu_custom_call.1']
    #allocation4 [shape = 's32[2]{0}', space=sflag, size = 0x8, scoped, tag = 'scoped memory for tpu_custom_call.1']
    #allocation5 [shape = 'u8[1024]{0}', space=vmem, size = 0x400, scoped, tag = 'input window, operand 2']
    #allocation6 [shape = 's32[2]{0}', space=sflag, size = 0x8, scoped, tag = 'scoped memory for tpu_custom_call.1']
    #allocation7 [shape = 'u8[4096]{0}', space=vmem, size = 0x1000, scoped, tag = 'input window, operand 3, single buffered']
    #allocation8 [shape = 'u8[512]{0}', space=vmem, size = 0x400, scoped, tag = 'input window, operand 5, single buffered']
    #allocation9 [shape = 's32[1]{0}', space=sflag, size = 0x4, scoped, tag = 'scoped memory for tpu_custom_call.1']
    #allocation10 [shape = 'u8[1024]{0}', space=vmem, size = 0x400, scoped, tag = 'input window, operand 6, single buffered']
    #allocation11 [shape = 'u8[8192]{0}', space=vmem, size = 0x2000, scoped, tag = 'input window, operand 10, single buffered']
    #allocation12 [shape = 's32[1]{0}', space=sflag, size = 0x4, scoped, tag = 'scoped memory for tpu_custom_call.1']
    #allocation13 [shape = 'u8[8192]{0}', space=vmem, size = 0x2000, scoped, tag = 'input window, operand 12, single buffered']
    #allocation14 [shape = 'u8[8192]{0}', space=vmem, size = 0x2000, scoped, tag = 'input window, operand 14, single buffered']
    #allocation15 [shape = 's32[1]{0}', space=sflag, size = 0x4, scoped, tag = 'scoped memory for tpu_custom_call.1']
    #allocation16 [shape = 'u8[4096]{0}', space=vmem, size = 0x1000, scoped, tag = 'output window, operand 0']
    %20 = vsyncpa [#allocation3], 0
    %s21 = scalar_lea.sflag [#allocation3], 1
    %22 = vsyncpa %s21, 0
    %23 = vsyncpa [#allocation6], 0
    %s24 = scalar_lea.sflag [#allocation6], 1
    %25 = vsyncpa %s24, 0
    %26 = vsyncpa [#allocation9], 0
    %27 = vsyncpa [#allocation12], 0
    %28 = vsyncpa [#allocation15], 0
    %29 = vsyncpa [#allocation4], 0
    %s30 = scalar_lea.sflag [#allocation4], 1
    %31 = vsyncpa %s30, 0
    loop: start=0, step=1, limit=4
    $region2: #{tpu_custom_call.1} parent=1 // loop_pre_header
      _
    $region3: #{tpu_custom_call.1} parent=1 // loop_header
      %s33 = sphi 0, %s37
      %p34 = scmp.ge.s32.totalorder %s33, 4
      %s43 = sphi 0, %s45
      %s46 = sphi 0, %s43
      %s47 = sphi 0, %s46
      %s63 = sphi 0, %s47
      %s69 = sphi 0, %s71
      %s72 = sphi 0, %s69
      %s73 = sphi 0, %s72
      %s89 = sphi 0, %s73
      %s95 = sphi 0, %s97
      %s98 = sphi 0, %s95
      %s99 = sphi 0, %s98
      %s115 = sphi 0, %s99
      %s119 = sphi 0, %s119
      %s121 = sphi 0, %s119
      %s122 = sphi 0, %s121
      %s136 = sphi 0, %s122
      %s140 = sphi 0, %s140
      %s142 = sphi 0, %s140
      %s143 = sphi 0, %s142
      %s157 = sphi 0, %s143
      %s161 = sphi 0, %s161
      %s163 = sphi 0, %s161
      %s164 = sphi 0, %s163
      %s178 = sphi 0, %s164
      %s182 = sphi 0, %s182
      %s184 = sphi 0, %s182
      %s185 = sphi 0, %s184
      %s199 = sphi 0, %s185
      %s203 = sphi 0, %s203
      %s205 = sphi 0, %s203
      %s206 = sphi 0, %s205
      %s220 = sphi 0, %s206
      %s224 = sphi 0, %s224
      %s226 = sphi 0, %s224
      %s227 = sphi 0, %s226
      %s241 = sphi 0, %s227
      %s245 = sphi 0, %s245
      %s247 = sphi 0, %s245
      %s248 = sphi 0, %s247
      %s262 = sphi 0, %s248
      %s266 = sphi 0, %s266
      %s268 = sphi 0, %s266
      %s269 = sphi 0, %s268
      %s283 = sphi 0, %s269
      %s287 = sphi 0, %s287
      %s289 = sphi 0, %s287
      %s290 = sphi 0, %s289
      %s304 = sphi 0, %s290
      %s308 = sphi 0, %s308
      %s310 = sphi 0, %s308
      %s311 = sphi 0, %s310
      %s325 = sphi 0, %s311
      %s329 = sphi 0, %s329
      %s331 = sphi 0, %s329
      %s332 = sphi 0, %s331
      %s346 = sphi 0, %s332
      %s350 = sphi 0, %s350
      %s352 = sphi 0, %s350
      %s353 = sphi 0, %s352
      %s367 = sphi 0, %s353
      %s373 = sphi 0, %s375
      %s376 = sphi 0, %s373
      %s377 = sphi 0, %s376
      %s393 = sphi 0, %s377
    $region4: #{tpu_custom_call.1} parent=1 // loop_header_branch
      %36 = sbr.rel (%p34) target = $region8
    $region5: #{tpu_custom_call.1} parent=1 // loop_body
      %s38 = ssub.s32 %s33, 1
      %s39 = ssub.s32 %s33, 2
      %s40 = sadd.s32 %s33, 1
      %s41 = ssub.s32 %s33, %s40
      %p42 = scmp.eq.s32.totalorder %s41, 0
      %s44 = sadd.s32 %s43, 1
      %s45 = scalar_select %p42, %s43, %s44
      %p48 = pneg %p42
      %p49 = scmp.eq.s32.totalorder %s33, 1
      %p50 = por %p48, %p49
      %p51 = scmp.ne.s32.totalorder %s43, %s46
      %p52 = scmp.eq.s32.totalorder %s33, 0
      %p53 = por %p51, %p52
      %p54 = scmp.ne.s32.totalorder %s43, %s46
      %p55 = scmp.eq.s32.totalorder %s38, 1
      %p56 = por %p54, %p55
      %p57 = scmp.ne.s32.totalorder %s46, %s47
      %p58 = scmp.eq.s32.totalorder %s38, 0
      %p59 = por %p57, %p58
      %p60 = scmp.ne.s32.totalorder %s46, %s47
      %p61 = scmp.eq.s32.totalorder %s39, 1
      %p62 = por %p60, %p61
      %p64 = scmp.ne.s32.totalorder %s47, %s63
      %p65 = scmp.eq.s32.totalorder %s39, 0
      %p66 = por %p64, %p65
      %s67 = ssub.s32 %s33, %s40
      %p68 = scmp.eq.s32.totalorder %s67, 0
      %s70 = sadd.s32 %s69, 1
      %s71 = scalar_select %p68, %s69, %s70
      %p74 = pneg %p68
      %p75 = scmp.eq.s32.totalorder %s33, 1
      %p76 = por %p74, %p75
      %p77 = scmp.ne.s32.totalorder %s69, %s72
      %p78 = scmp.eq.s32.totalorder %s33, 0
      %p79 = por %p77, %p78
      %p80 = scmp.ne.s32.totalorder %s69, %s72
      %p81 = scmp.eq.s32.totalorder %s38, 1
      %p82 = por %p80, %p81
      %p83 = scmp.ne.s32.totalorder %s72, %s73
      %p84 = scmp.eq.s32.totalorder %s38, 0
      %p85 = por %p83, %p84
      %p86 = scmp.ne.s32.totalorder %s72, %s73
      %p87 = scmp.eq.s32.totalorder %s39, 1
      %p88 = por %p86, %p87
      %p90 = scmp.ne.s32.totalorder %s73, %s89
      %p91 = scmp.eq.s32.totalorder %s39, 0
      %p92 = por %p90, %p91
      %s93 = ssub.s32 %s33, %s40
      %p94 = scmp.eq.s32.totalorder %s93, 0
      %s96 = sadd.s32 %s95, 1
      %s97 = scalar_select %p94, %s95, %s96
      %p100 = pneg %p94
      %p101 = scmp.eq.s32.totalorder %s33, 1
      %p102 = por %p100, %p101
      %p103 = scmp.ne.s32.totalorder %s95, %s98
      %p104 = scmp.eq.s32.totalorder %s33, 0
      %p105 = por %p103, %p104
      %p106 = scmp.ne.s32.totalorder %s95, %s98
      %p107 = scmp.eq.s32.totalorder %s38, 1
      %p108 = por %p106, %p107
      %p109 = scmp.ne.s32.totalorder %s98, %s99
      %p110 = scmp.eq.s32.totalorder %s38, 0
      %p111 = por %p109, %p110
      %p112 = scmp.ne.s32.totalorder %s98, %s99
      %p113 = scmp.eq.s32.totalorder %s39, 1
      %p114 = por %p112, %p113
      %p116 = scmp.ne.s32.totalorder %s99, %s115
      %p117 = scmp.eq.s32.totalorder %s39, 0
      %p118 = por %p116, %p117
      %s120 = sadd.s32 %s119, 1
      %p123 = scmp.eq.s32.totalorder %s33, 1
      %p124 = scmp.ne.s32.totalorder %s119, %s121
      %p125 = scmp.eq.s32.totalorder %s33, 0
      %p126 = por %p124, %p125
      %p127 = scmp.ne.s32.totalorder %s119, %s121
      %p128 = scmp.eq.s32.totalorder %s38, 1
      %p129 = por %p127, %p128
      %p130 = scmp.ne.s32.totalorder %s121, %s122
      %p131 = scmp.eq.s32.totalorder %s38, 0
      %p132 = por %p130, %p131
      %p133 = scmp.ne.s32.totalorder %s121, %s122
      %p134 = scmp.eq.s32.totalorder %s39, 1
      %p135 = por %p133, %p134
      %p137 = scmp.ne.s32.totalorder %s122, %s136
      %p138 = scmp.eq.s32.totalorder %s39, 0
      %p139 = por %p137, %p138
      %s141 = sadd.s32 %s140, 1
      %p144 = scmp.eq.s32.totalorder %s33, 1
      %p145 = scmp.ne.s32.totalorder %s140, %s142
      %p146 = scmp.eq.s32.totalorder %s33, 0
      %p147 = por %p145, %p146
      %p148 = scmp.ne.s32.totalorder %s140, %s142
      %p149 = scmp.eq.s32.totalorder %s38, 1
      %p150 = por %p148, %p149
      %p151 = scmp.ne.s32.totalorder %s142, %s143
      %p152 = scmp.eq.s32.totalorder %s38, 0
      %p153 = por %p151, %p152
      %p154 = scmp.ne.s32.totalorder %s142, %s143
      %p155 = scmp.eq.s32.totalorder %s39, 1
      %p156 = por %p154, %p155
      %p158 = scmp.ne.s32.totalorder %s143, %s157
      %p159 = scmp.eq.s32.totalorder %s39, 0
      %p160 = por %p158, %p159
      %s162 = sadd.s32 %s161, 1
      %p165 = scmp.eq.s32.totalorder %s33, 1
      %p166 = scmp.ne.s32.totalorder %s161, %s163
      %p167 = scmp.eq.s32.totalorder %s33, 0
      %p168 = por %p166, %p167
      %p169 = scmp.ne.s32.totalorder %s161, %s163
      %p170 = scmp.eq.s32.totalorder %s38, 1
      %p171 = por %p169, %p170
      %p172 = scmp.ne.s32.totalorder %s163, %s164
      %p173 = scmp.eq.s32.totalorder %s38, 0
      %p174 = por %p172, %p173
      %p175 = scmp.ne.s32.totalorder %s163, %s164
      %p176 = scmp.eq.s32.totalorder %s39, 1
      %p177 = por %p175, %p176
      %p179 = scmp.ne.s32.totalorder %s164, %s178
      %p180 = scmp.eq.s32.totalorder %s39, 0
      %p181 = por %p179, %p180
      %s183 = sadd.s32 %s182, 1
      %p186 = scmp.eq.s32.totalorder %s33, 1
      %p187 = scmp.ne.s32.totalorder %s182, %s184
      %p188 = scmp.eq.s32.totalorder %s33, 0
      %p189 = por %p187, %p188
      %p190 = scmp.ne.s32.totalorder %s182, %s184
      %p191 = scmp.eq.s32.totalorder %s38, 1
      %p192 = por %p190, %p191
      %p193 = scmp.ne.s32.totalorder %s184, %s185
      %p194 = scmp.eq.s32.totalorder %s38, 0
      %p195 = por %p193, %p194
      %p196 = scmp.ne.s32.totalorder %s184, %s185
      %p197 = scmp.eq.s32.totalorder %s39, 1
      %p198 = por %p196, %p197
      %p200 = scmp.ne.s32.totalorder %s185, %s199
      %p201 = scmp.eq.s32.totalorder %s39, 0
      %p202 = por %p200, %p201
      %s204 = sadd.s32 %s203, 1
      %p207 = scmp.eq.s32.totalorder %s33, 1
      %p208 = scmp.ne.s32.totalorder %s203, %s205
      %p209 = scmp.eq.s32.totalorder %s33, 0
      %p210 = por %p208, %p209
      %p211 = scmp.ne.s32.totalorder %s203, %s205
      %p212 = scmp.eq.s32.totalorder %s38, 1
      %p213 = por %p211, %p212
      %p214 = scmp.ne.s32.totalorder %s205, %s206
      %p215 = scmp.eq.s32.totalorder %s38, 0
      %p216 = por %p214, %p215
      %p217 = scmp.ne.s32.totalorder %s205, %s206
      %p218 = scmp.eq.s32.totalorder %s39, 1
      %p219 = por %p217, %p218
      %p221 = scmp.ne.s32.totalorder %s206, %s220
      %p222 = scmp.eq.s32.totalorder %s39, 0
      %p223 = por %p221, %p222
      %s225 = sadd.s32 %s224, 1
      %p228 = scmp.eq.s32.totalorder %s33, 1
      %p229 = scmp.ne.s32.totalorder %s224, %s226
      %p230 = scmp.eq.s32.totalorder %s33, 0
      %p231 = por %p229, %p230
      %p232 = scmp.ne.s32.totalorder %s224, %s226
      %p233 = scmp.eq.s32.totalorder %s38, 1
      %p234 = por %p232, %p233
      %p235 = scmp.ne.s32.totalorder %s226, %s227
      %p236 = scmp.eq.s32.totalorder %s38, 0
      %p237 = por %p235, %p236
      %p238 = scmp.ne.s32.totalorder %s226, %s227
      %p239 = scmp.eq.s32.totalorder %s39, 1
      %p240 = por %p238, %p239
      %p242 = scmp.ne.s32.totalorder %s227, %s241
      %p243 = scmp.eq.s32.totalorder %s39, 0
      %p244 = por %p242, %p243
      %s246 = sadd.s32 %s245, 1
      %p249 = scmp.eq.s32.totalorder %s33, 1
      %p250 = scmp.ne.s32.totalorder %s245, %s247
      %p251 = scmp.eq.s32.totalorder %s33, 0
      %p252 = por %p250, %p251
      %p253 = scmp.ne.s32.totalorder %s245, %s247
      %p254 = scmp.eq.s32.totalorder %s38, 1
      %p255 = por %p253, %p254
      %p256 = scmp.ne.s32.totalorder %s247, %s248
      %p257 = scmp.eq.s32.totalorder %s38, 0
      %p258 = por %p256, %p257
      %p259 = scmp.ne.s32.totalorder %s247, %s248
      %p260 = scmp.eq.s32.totalorder %s39, 1
      %p261 = por %p259, %p260
      %p263 = scmp.ne.s32.totalorder %s248, %s262
      %p264 = scmp.eq.s32.totalorder %s39, 0
      %p265 = por %p263, %p264
      %s267 = sadd.s32 %s266, 1
      %p270 = scmp.eq.s32.totalorder %s33, 1
      %p271 = scmp.ne.s32.totalorder %s266, %s268
      %p272 = scmp.eq.s32.totalorder %s33, 0
      %p273 = por %p271, %p272
      %p274 = scmp.ne.s32.totalorder %s266, %s268
      %p275 = scmp.eq.s32.totalorder %s38, 1
      %p276 = por %p274, %p275
      %p277 = scmp.ne.s32.totalorder %s268, %s269
      %p278 = scmp.eq.s32.totalorder %s38, 0
      %p279 = por %p277, %p278
      %p280 = scmp.ne.s32.totalorder %s268, %s269
      %p281 = scmp.eq.s32.totalorder %s39, 1
      %p282 = por %p280, %p281
      %p284 = scmp.ne.s32.totalorder %s269, %s283
      %p285 = scmp.eq.s32.totalorder %s39, 0
      %p286 = por %p284, %p285
      %s288 = sadd.s32 %s287, 1
      %p291 = scmp.eq.s32.totalorder %s33, 1
      %p292 = scmp.ne.s32.totalorder %s287, %s289
      %p293 = scmp.eq.s32.totalorder %s33, 0
      %p294 = por %p292, %p293
      %p295 = scmp.ne.s32.totalorder %s287, %s289
      %p296 = scmp.eq.s32.totalorder %s38, 1
      %p297 = por %p295, %p296
      %p298 = scmp.ne.s32.totalorder %s289, %s290
      %p299 = scmp.eq.s32.totalorder %s38, 0
      %p300 = por %p298, %p299
      %p301 = scmp.ne.s32.totalorder %s289, %s290
      %p302 = scmp.eq.s32.totalorder %s39, 1
      %p303 = por %p301, %p302
      %p305 = scmp.ne.s32.totalorder %s290, %s304
      %p306 = scmp.eq.s32.totalorder %s39, 0
      %p307 = por %p305, %p306
      %s309 = sadd.s32 %s308, 1
      %p312 = scmp.eq.s32.totalorder %s33, 1
      %p313 = scmp.ne.s32.totalorder %s308, %s310
      %p314 = scmp.eq.s32.totalorder %s33, 0
      %p315 = por %p313, %p314
      %p316 = scmp.ne.s32.totalorder %s308, %s310
      %p317 = scmp.eq.s32.totalorder %s38, 1
      %p318 = por %p316, %p317
      %p319 = scmp.ne.s32.totalorder %s310, %s311
      %p320 = scmp.eq.s32.totalorder %s38, 0
      %p321 = por %p319, %p320
      %p322 = scmp.ne.s32.totalorder %s310, %s311
      %p323 = scmp.eq.s32.totalorder %s39, 1
      %p324 = por %p322, %p323
      %p326 = scmp.ne.s32.totalorder %s311, %s325
      %p327 = scmp.eq.s32.totalorder %s39, 0
      %p328 = por %p326, %p327
      %s330 = sadd.s32 %s329, 1
      %p333 = scmp.eq.s32.totalorder %s33, 1
      %p334 = scmp.ne.s32.totalorder %s329, %s331
      %p335 = scmp.eq.s32.totalorder %s33, 0
      %p336 = por %p334, %p335
      %p337 = scmp.ne.s32.totalorder %s329, %s331
      %p338 = scmp.eq.s32.totalorder %s38, 1
      %p339 = por %p337, %p338
      %p340 = scmp.ne.s32.totalorder %s331, %s332
      %p341 = scmp.eq.s32.totalorder %s38, 0
      %p342 = por %p340, %p341
      %p343 = scmp.ne.s32.totalorder %s331, %s332
      %p344 = scmp.eq.s32.totalorder %s39, 1
      %p345 = por %p343, %p344
      %p347 = scmp.ne.s32.totalorder %s332, %s346
      %p348 = scmp.eq.s32.totalorder %s39, 0
      %p349 = por %p347, %p348
      %s351 = sadd.s32 %s350, 1
      %p354 = scmp.eq.s32.totalorder %s33, 1
      %p355 = scmp.ne.s32.totalorder %s350, %s352
      %p356 = scmp.eq.s32.totalorder %s33, 0
      %p357 = por %p355, %p356
      %p358 = scmp.ne.s32.totalorder %s350, %s352
      %p359 = scmp.eq.s32.totalorder %s38, 1
      %p360 = por %p358, %p359
      %p361 = scmp.ne.s32.totalorder %s352, %s353
      %p362 = scmp.eq.s32.totalorder %s38, 0
      %p363 = por %p361, %p362
      %p364 = scmp.ne.s32.totalorder %s352, %s353
      %p365 = scmp.eq.s32.totalorder %s39, 1
      %p366 = por %p364, %p365
      %p368 = scmp.ne.s32.totalorder %s353, %s367
      %p369 = scmp.eq.s32.totalorder %s39, 0
      %p370 = por %p368, %p369
      %s371 = ssub.s32 %s33, %s40
      %p372 = scmp.eq.s32.totalorder %s371, 0
      %s374 = sadd.s32 %s373, 1
      %s375 = scalar_select %p372, %s373, %s374
      %p378 = pneg %p372
      %p379 = scmp.eq.s32.totalorder %s33, 1
      %p380 = por %p378, %p379
      %p381 = scmp.ne.s32.totalorder %s373, %s376
      %p382 = scmp.eq.s32.totalorder %s33, 0
      %p383 = por %p381, %p382
      %p384 = scmp.ne.s32.totalorder %s373, %s376
      %p385 = scmp.eq.s32.totalorder %s38, 1
      %p386 = por %p384, %p385
      %p387 = scmp.ne.s32.totalorder %s376, %s377
      %p388 = scmp.eq.s32.totalorder %s38, 0
      %p389 = por %p387, %p388
      %p390 = scmp.ne.s32.totalorder %s376, %s377
      %p391 = scmp.eq.s32.totalorder %s39, 1
      %p392 = por %p390, %p391
      %p394 = scmp.ne.s32.totalorder %s377, %s393
      %p395 = scmp.eq.s32.totalorder %s39, 0
      %p396 = por %p394, %p395
      %p397 = scmp.le.s32.totalorder 1, %s33
      %p398 = scmp.lt.s32.totalorder %s33, 3
      %p399 = pnand %p397, %p398
      %p400 = pneg %p399
      // Predicated region
      $region9: #{tpu_custom_call.1} parent=5 // pred_check
        _
      $region10: #{tpu_custom_call.1} parent=5 // pred_check_branch
        %402 = sbr.rel (%p399) target = $region12
      $region11: #{tpu_custom_call.1} parent=5 // pred_region
        %s403 = ssub.s32 %s33, 1
        // Predicated region
        $region13: #{tpu_custom_call.1} parent=11 // pred_check
          %p404 = pneg %p132
        $region14: #{tpu_custom_call.1} parent=11 // pred_check_branch
          %406 = sbr.rel (%p404) target = $region16
        $region15: #{tpu_custom_call.1} parent=11 // pred_region
          %s408 = ssub.s32 128, 128
          %409 = vsyncadd [#allocation6], %s408
          %s410 = sshll.u32 [#allocation7], 4
          %s411 = int_to_ptr.vmem [resolvable:$true] %s410
          %416 = dma.hbm_to_vmem [thread:$0]  %s3, 128, %s411, [#allocation6], 64, 64, 4
        $region16: #{tpu_custom_call.1} parent=11 // pred_fallthru
          _
        // Predicated region
        $region17: #{tpu_custom_call.1} parent=11 // pred_check
          %p417 = pneg %p153
        $region18: #{tpu_custom_call.1} parent=11 // pred_check_branch
          %419 = sbr.rel (%p417) target = $region20
        $region19: #{tpu_custom_call.1} parent=11 // pred_region
          _
        $region20: #{tpu_custom_call.1} parent=11 // pred_fallthru
          _
        // Predicated region
        $region21: #{tpu_custom_call.1} parent=11 // pred_check
          %p420 = pneg %p174
        $region22: #{tpu_custom_call.1} parent=11 // pred_check_branch
          %422 = sbr.rel (%p420) target = $region24
        $region23: #{tpu_custom_call.1} parent=11 // pred_region
          %s424 = ssub.s32 16, 16
          %425 = vsyncadd [#allocation9], %s424
          %s427 = sshll.u32 [#allocation8], 4
          %s428 = int_to_ptr.vmem [resolvable:$true] %s427
          %430 = dma.hbm_to_vmem [thread:$0]  %s5, 16, %s428, [#allocation9]
        $region24: #{tpu_custom_call.1} parent=11 // pred_fallthru
          _
        // Predicated region
        $region25: #{tpu_custom_call.1} parent=11 // pred_check
          %p431 = pneg %p195
        $region26: #{tpu_custom_call.1} parent=11 // pred_check_branch
          %433 = sbr.rel (%p431) target = $region28
        $region27: #{tpu_custom_call.1} parent=11 // pred_region
          %s435 = ssub.s32 32, 32
          %436 = vsyncadd [#allocation9], %s435
          %s438 = sshll.u32 [#allocation10], 4
          %s439 = int_to_ptr.vmem [resolvable:$true] %s438
          %441 = dma.hbm_to_vmem [thread:$0]  %s6, 32, %s439, [#allocation9]
        $region28: #{tpu_custom_call.1} parent=11 // pred_fallthru
          _
        // Predicated region
        $region29: #{tpu_custom_call.1} parent=11 // pred_check
          %p442 = pneg %p216
        $region30: #{tpu_custom_call.1} parent=11 // pred_check_branch
          %444 = sbr.rel (%p442) target = $region32
        $region31: #{tpu_custom_call.1} parent=11 // pred_region
          _
        $region32: #{tpu_custom_call.1} parent=11 // pred_fallthru
          _
        // Predicated region
        $region33: #{tpu_custom_call.1} parent=11 // pred_check
          %p445 = pneg %p237
        $region34: #{tpu_custom_call.1} parent=11 // pred_check_branch
          %447 = sbr.rel (%p445) target = $region36
        $region35: #{tpu_custom_call.1} parent=11 // pred_region
          _
        $region36: #{tpu_custom_call.1} parent=11 // pred_fallthru
          _
        // Predicated region
        $region37: #{tpu_custom_call.1} parent=11 // pred_check
          %p448 = pneg %p258
        $region38: #{tpu_custom_call.1} parent=11 // pred_check_branch
          %450 = sbr.rel (%p448) target = $region40
        $region39: #{tpu_custom_call.1} parent=11 // pred_region
          _
        $region40: #{tpu_custom_call.1} parent=11 // pred_fallthru
          _
        // Predicated region
        $region41: #{tpu_custom_call.1} parent=11 // pred_check
          %p451 = pneg %p279
        $region42: #{tpu_custom_call.1} parent=11 // pred_check_branch
          %453 = sbr.rel (%p451) target = $region44
        $region43: #{tpu_custom_call.1} parent=11 // pred_region
          %s455 = ssub.s32 256, 256
          %456 = vsyncadd [#allocation12], %s455
          %s457 = sshll.u32 [#allocation11], 4
          %s458 = int_to_ptr.vmem [resolvable:$true] %s457
          %463 = dma.hbm_to_vmem [thread:$0]  %s10, 256, %s458, [#allocation12], 64, 64, 4
        $region44: #{tpu_custom_call.1} parent=11 // pred_fallthru
          _
        // Predicated region
        $region45: #{tpu_custom_call.1} parent=11 // pred_check
          %p464 = pneg %p300
        $region46: #{tpu_custom_call.1} parent=11 // pred_check_branch
          %466 = sbr.rel (%p464) target = $region48
        $region47: #{tpu_custom_call.1} parent=11 // pred_region
          _
        $region48: #{tpu_custom_call.1} parent=11 // pred_fallthru
          _
        // Predicated region
        $region49: #{tpu_custom_call.1} parent=11 // pred_check
          %p467 = pneg %p321
        $region50: #{tpu_custom_call.1} parent=11 // pred_check_branch
          %469 = sbr.rel (%p467) target = $region52
        $region51: #{tpu_custom_call.1} parent=11 // pred_region
          %s471 = ssub.s32 256, 256
          %472 = vsyncadd [#allocation12], %s471
          %s473 = sshll.u32 [#allocation13], 4
          %s474 = int_to_ptr.vmem [resolvable:$true] %s473
          %479 = dma.hbm_to_vmem [thread:$0]  %s12, 256, %s474, [#allocation12], 64, 64, 4
        $region52: #{tpu_custom_call.1} parent=11 // pred_fallthru
          _
        // Predicated region
        $region53: #{tpu_custom_call.1} parent=11 // pred_check
          %p480 = pneg %p342
        $region54: #{tpu_custom_call.1} parent=11 // pred_check_branch
          %482 = sbr.rel (%p480) target = $region56
        $region55: #{tpu_custom_call.1} parent=11 // pred_region
          _
        $region56: #{tpu_custom_call.1} parent=11 // pred_fallthru
          _
        // Predicated region
        $region57: #{tpu_custom_call.1} parent=11 // pred_check
          %p483 = pneg %p363
        $region58: #{tpu_custom_call.1} parent=11 // pred_check_branch
          %485 = sbr.rel (%p483) target = $region60
        $region59: #{tpu_custom_call.1} parent=11 // pred_region
          %s487 = ssub.s32 256, 256
          %488 = vsyncadd [#allocation15], %s487
          %s489 = sshll.u32 [#allocation14], 4
          %s490 = int_to_ptr.vmem [resolvable:$true] %s489
          %495 = dma.hbm_to_vmem [thread:$0]  %s14, 256, %s490, [#allocation15], 64, 64, 4
        $region60: #{tpu_custom_call.1} parent=11 // pred_fallthru
          _
      $region12: #{tpu_custom_call.1} parent=5 // pred_fallthru
        _
      %p496 = scmp.lt.s32.totalorder %s33, 2
      // Predicated region
      $region61: #{tpu_custom_call.1} parent=5 // pred_check
        %p497 = pneg %p496
      $region62: #{tpu_custom_call.1} parent=5 // pred_check_branch
        %499 = sbr.rel (%p497) target = $region64
      $region63: #{tpu_custom_call.1} parent=5 // pred_region
        // Predicated region
        $region65: #{tpu_custom_call.1} parent=63 // pred_check
          %p500 = pneg %p53
        $region66: #{tpu_custom_call.1} parent=63 // pred_check_branch
          %502 = sbr.rel (%p500) target = $region68
        $region67: #{tpu_custom_call.1} parent=63 // pred_region
          %p503 = scmp.lt.s32.totalorder %s33, 1
          %s504 = scalar_select %p503, %s33, 1
          %s505 = smul.addr %s504, 8
          %s506 = scalar_lea.vmem %s0, %s505
        $region68: #{tpu_custom_call.1} parent=63 // pred_fallthru
          _
        // Predicated region
        $region69: #{tpu_custom_call.1} parent=63 // pred_check
          %p507 = pneg %p79
        $region70: #{tpu_custom_call.1} parent=63 // pred_check_branch
          %509 = sbr.rel (%p507) target = $region72
        $region71: #{tpu_custom_call.1} parent=63 // pred_region
          %s510 = sand.u32 %s69, 1
          %s511 = scalar_lea.sflag [#allocation3], %s510
          %s512 = sand.u32 %s69, 1
          %s513 = smul.addr %s512, 4
          %s514 = scalar_lea.vmem [#allocation2], %s513
          %s516 = ssub.s32 64, 64
          %517 = vsyncadd %s511, %s516
          %s518 = smul.addr %s33, 64
          %s519 = scalar_lea.hbm %s1, %s518
          %s521 = sshll.u32 %s514, 4
          %s522 = int_to_ptr.vmem [resolvable:$true] %s521
          %524 = dma.hbm_to_vmem [thread:$0]  %s519, 64, %s522, %s511
        $region72: #{tpu_custom_call.1} parent=63 // pred_fallthru
          _
        // Predicated region
        $region73: #{tpu_custom_call.1} parent=63 // pred_check
          %p525 = pneg %p105
        $region74: #{tpu_custom_call.1} parent=63 // pred_check_branch
          %527 = sbr.rel (%p525) target = $region76
        $region75: #{tpu_custom_call.1} parent=63 // pred_region
          %s528 = sand.u32 %s33, 1
          %s529 = scalar_lea.sflag [#allocation6], %s528
          %s530 = sand.u32 %s95, 1
          %s531 = scalar_lea.vmem [#allocation5], %s530
          %s533 = ssub.s32 16, 16
          %534 = vsyncadd %s529, %s533
          %s535 = smul.addr %s33, 16
          %s536 = scalar_lea.hbm %s2, %s535
          %s538 = sshll.u32 %s531, 4
          %s539 = int_to_ptr.vmem [resolvable:$true] %s538
          %541 = dma.hbm_to_vmem [thread:$0]  %s536, 16, %s539, %s529
        $region76: #{tpu_custom_call.1} parent=63 // pred_fallthru
          _
      $region64: #{tpu_custom_call.1} parent=5 // pred_fallthru
        _
      %p542 = scmp.le.s32.totalorder 1, %s33
      %p543 = scmp.lt.s32.totalorder %s33, 3
      %p544 = pnand %p542, %p543
      %p545 = pneg %p544
      // Predicated region
      $region77: #{tpu_custom_call.1} parent=5 // pred_check
        _
      $region78: #{tpu_custom_call.1} parent=5 // pred_check_branch
        %547 = sbr.rel (%p544) target = $region80
      $region79: #{tpu_custom_call.1} parent=5 // pred_region
        %s548 = ssub.s32 %s33, 1
        %s549 = sand.u32 %s72, 1
        %s550 = scalar_lea.sflag [#allocation3], %s549
        %s551 = sand.u32 %s72, 1
        %s552 = smul.addr %s551, 4
        %s553 = scalar_lea.vmem [#allocation2], %s552
        // Predicated region
        $region81: #{tpu_custom_call.1} parent=79 // pred_check
          %p554 = pneg %p85
        $region82: #{tpu_custom_call.1} parent=79 // pred_check_branch
          %556 = sbr.rel (%p554) target = $region84
        $region83: #{tpu_custom_call.1} parent=79 // pred_region
          %557 = dma.done %s550, 64
        $region84: #{tpu_custom_call.1} parent=79 // pred_fallthru
          _
        %s558 = sand.u32 %s38, 1
        %s559 = scalar_lea.sflag [#allocation6], %s558
        %s560 = sand.u32 %s98, 1
        %s561 = scalar_lea.vmem [#allocation5], %s560
        // Predicated region
        $region85: #{tpu_custom_call.1} parent=79 // pred_check
          %p562 = pneg %p111
        $region86: #{tpu_custom_call.1} parent=79 // pred_check_branch
          %564 = sbr.rel (%p562) target = $region88
        $region87: #{tpu_custom_call.1} parent=79 // pred_region
          %565 = dma.done %s559, 16
        $region88: #{tpu_custom_call.1} parent=79 // pred_fallthru
          _
        // Predicated region
        $region89: #{tpu_custom_call.1} parent=79 // pred_check
          %p566 = pneg %p132
        $region90: #{tpu_custom_call.1} parent=79 // pred_check_branch
          %568 = sbr.rel (%p566) target = $region92
        $region91: #{tpu_custom_call.1} parent=79 // pred_region
          %569 = dma.done [#allocation6], 128
        $region92: #{tpu_custom_call.1} parent=79 // pred_fallthru
          _
        // Predicated region
        $region93: #{tpu_custom_call.1} parent=79 // pred_check
          %p570 = pneg %p174
        $region94: #{tpu_custom_call.1} parent=79 // pred_check_branch
          %572 = sbr.rel (%p570) target = $region96
        $region95: #{tpu_custom_call.1} parent=79 // pred_region
          %573 = dma.done [#allocation9], 16
        $region96: #{tpu_custom_call.1} parent=79 // pred_fallthru
          _
        // Predicated region
        $region97: #{tpu_custom_call.1} parent=79 // pred_check
          %p574 = pneg %p195
        $region98: #{tpu_custom_call.1} parent=79 // pred_check_branch
          %576 = sbr.rel (%p574) target = $region100
        $region99: #{tpu_custom_call.1} parent=79 // pred_region
          %577 = dma.done [#allocation9], 32
        $region100: #{tpu_custom_call.1} parent=79 // pred_fallthru
          _
        // Predicated region
        $region101: #{tpu_custom_call.1} parent=79 // pred_check
          %p578 = pneg %p279
        $region102: #{tpu_custom_call.1} parent=79 // pred_check_branch
          %580 = sbr.rel (%p578) target = $region104
        $region103: #{tpu_custom_call.1} parent=79 // pred_region
          %581 = dma.done [#allocation12], 256
        $region104: #{tpu_custom_call.1} parent=79 // pred_fallthru
          _
        // Predicated region
        $region105: #{tpu_custom_call.1} parent=79 // pred_check
          %p582 = pneg %p321
        $region106: #{tpu_custom_call.1} parent=79 // pred_check_branch
          %584 = sbr.rel (%p582) target = $region108
        $region107: #{tpu_custom_call.1} parent=79 // pred_region
          %585 = dma.done [#allocation12], 256
        $region108: #{tpu_custom_call.1} parent=79 // pred_fallthru
          _
        // Predicated region
        $region109: #{tpu_custom_call.1} parent=79 // pred_check
          %p586 = pneg %p363
        $region110: #{tpu_custom_call.1} parent=79 // pred_check_branch
          %588 = sbr.rel (%p586) target = $region112
        $region111: #{tpu_custom_call.1} parent=79 // pred_region
          %589 = dma.done [#allocation15], 256
        $region112: #{tpu_custom_call.1} parent=79 // pred_fallthru
          _
        %p590 = scmp.lt.s32.totalorder %s38, 1
        %s591 = scalar_select %p590, %s38, 1
        %s592 = smul.addr %s591, 8
        %s593 = scalar_lea.vmem %s0, %s592
        %p594 = pneg %p59
        %p595 = pneg %p56
        %s596 = sand.u32 %s72, 1
        %s597 = scalar_lea.sflag [#allocation3], %s596
        %s598 = sand.u32 %s72, 1
        %s599 = smul.addr %s598, 4
        %s600 = scalar_lea.vmem [#allocation2], %s599
        %p601 = pneg %p85
        %p602 = pneg %p82
        %s603 = sand.u32 %s38, 1
        %s604 = scalar_lea.sflag [#allocation6], %s603
        %s605 = sand.u32 %s98, 1
        %s606 = scalar_lea.vmem [#allocation5], %s605
        %p607 = pneg %p111
        %p608 = pneg %p108
        %p609 = pneg %p132
        %p610 = pneg %p129
        %p611 = pneg %p153
        %p612 = pneg %p150
        %p613 = pneg %p174
        %p614 = pneg %p171
        %p615 = pneg %p195
        %p616 = pneg %p192
        %p617 = pneg %p216
        %p618 = pneg %p213
        %p619 = pneg %p237
        %p620 = pneg %p234
        %p621 = pneg %p258
        %p622 = pneg %p255
        %p623 = pneg %p279
        %p624 = pneg %p276
        %p625 = pneg %p300
        %p626 = pneg %p297
        %p627 = pneg %p321
        %p628 = pneg %p318
        %p629 = pneg %p342
        %p630 = pneg %p339
        %p631 = pneg %p363
        %p632 = pneg %p360
        %p633 = pneg %p389
        %p634 = pneg %p386
        %s635 = sand.u32 %s376, 1
        %s636 = scalar_lea.sflag [#allocation4], %s635
        %s637 = sand.u32 %s376, 1
        %s638 = smul.addr %s637, 4
        %s639 = scalar_lea.vmem [#allocation16], %s638
        %p640 = scmp.lt.s32.totalorder %s38, 1
        %s641 = scalar_select %p640, %s38, 1
        %s642 = smul.addr %s641, 8
        %s643 = scalar_lea.vmem %s0, %s642
        %v645 = vld [vmem:[%s643] sm:$0xff]
        %v646 = vpack.c.bf16 %v645, %v645
        %v647 = vld [vmem:[#allocation7] sm:$0xf]
        %v648 = vld [vmem:[#allocation7 + $0x4] sm:$0xf]
        %v651 = vunpack.c.l.b16 %v647
        %v652 = vunpack.c.l.b16 %v648
        %v653 = vpack.c.b16 %v652, %v651
        %vm655 = vcmask 130048
        %v657 = vsel %vm655, %v646, 0
        %659 = vmatprep.subr.bf16.mxu0 0
        %660 = vmatpush1.bf16.msra.mxu0 %v653
        %661 = vmatprep.subr.bf16.mxu0 0
        %662 = vmatpush1.bf16.msra.mxu0 0
        %663 = vmatprep.subr.bf16.mxu0 0
        %664 = vmatpush1.bf16.msra.mxu0 0
        %665 = vmatprep.subr.bf16.mxu0 0
        %666 = vmatpush1.bf16.msra.mxu0 0
        %667 = vmatprep.subr.bf16.mxu0 0
        %668 = vmatpush1.bf16.msra.mxu0 0
        %669 = vmatprep.subr.bf16.mxu0 0
        %670 = vmatpush1.bf16.msra.mxu0 0
        %671 = vmatprep.subr.bf16.mxu0 0
        %672 = vmatpush1.bf16.msra.mxu0 0
        %673 = vmatprep.subr.bf16.mxu0 0
        %674 = vmatpush1.bf16.msra.mxu0 0
        %675 = vmatprep.subr.bf16.mxu0 0
        %676 = vmatpush1.bf16.msra.mxu0 0
        %677 = vmatprep.subr.bf16.mxu0 0
        %678 = vmatpush1.bf16.msra.mxu0 0
        %679 = vmatprep.subr.bf16.mxu0 0
        %680 = vmatpush1.bf16.msra.mxu0 0
        %681 = vmatprep.subr.bf16.mxu0 0
        %682 = vmatpush1.bf16.msra.mxu0 0
        %683 = vmatprep.subr.bf16.mxu0 0
        %684 = vmatpush1.bf16.msra.mxu0 0
        %685 = vmatprep.subr.bf16.mxu0 0
        %686 = vmatpush1.bf16.msra.mxu0 0
        %687 = vmatprep.subr.bf16.mxu0 0
        %688 = vmatpush1.bf16.msra.mxu0 0
        %689 = vmatprep.subr.bf16.mxu0 0
        %690 = vmatpush1.bf16.msra.mxu0 0
        %691 = vmatprep.mubr.bf16.mxu0 0
        %692 = vmatmul.mubr.bf16.gmra.mrb[0].mxu0 %v657
        %v693 = vpop.f32.mrb[0].mxu0
        %v694 = vadd.f32 0.0, %v693
        %v695 = vpop.f32.mrb[0].mxu0
        %v696 = vpop.f32.mrb[0].mxu0
        %v697 = vpop.f32.mrb[0].mxu0
        %698 = vdwg.mxu0
        %vm699 = vcmask 261120
        %v700 = vsel %vm699, %v694, 0.0
        %701 = vadd.xlane.f32.xlu0 %v700
        %v702 = vpop.xlane.xlu0 %701
        %v703 = vrcp.pop 32.0
        %v704 = vmul.f32 %v702, %v703
        %v705 = vsub.f32 %v694, %v704
        %v706 = vmul.f32 %v705, %v705
        %v707 = vsel %vm699, %v706, 0.0
        %708 = vadd.xlane.f32.xlu0 %v707
        %v709 = vpop.xlane.xlu0 %708
        %v710 = vmul.f32 %v709, %v703
        %v711 = vadd.f32 %v710, 1e-05
        %v712 = vrsqrt.pop %v711
        %v713 = vmul.f32 %v705, %v712
        %v714 = vld [vmem:[%s4] sm:$0x1]
        %v716 = vlaneseq
        %v717 = vshrl.u32 %v716, 7
        %v718 = vsub.s32 0, %v717
        %v719 = vrot.slane %v714, %v718
        %v721 = vmul.f32 %v713, %v719
        %v722 = vld [vmem:[#allocation8] sm:$0x1]
        %v724 = vlaneseq
        %v725 = vshrl.u32 %v724, 7
        %v726 = vsub.s32 0, %v725
        %v727 = vrot.slane %v722, %v726
        %v729 = vadd.f32 %v721, %v727
        %v730 = vmul.f32 %v729, %v729
        %v731 = vmul.f32 %v729, %v730
        %v732 = vmul.f32 %v731, 0.044715
        %v733 = vadd.f32 %v729, %v732
        %v734 = vmul.f32 %v733, 0.7978846
        %v735 = vtanh.pop %v734
        %v736 = vadd.f32 %v735, 1.0
        %v737 = vmul.f32 %v736, 0.5
        %v738 = vmul.f32 %v729, %v737
        %v739 = vld [vmem:[%s553] sm:$0xf]
        %v740 = vunpack.c.l.bf16 %v739
        %v741 = vadd.f32 %v738, %v740
        %v742 = vpack.c.bf16 %v741, %v741
        %v743 = vld [vmem:[%s8] sm:$0xf]
        %v744 = vld [vmem:[%s8 + $0x4] sm:$0xf]
        %v745 = vld [vmem:[%s8 + $0x8] sm:$0xf]
        %v746 = vld [vmem:[%s8 + $0xc] sm:$0xf]
        %v751 = vunpack.c.l.b16 %v743
        %v752 = vunpack.c.l.b16 %v744
        %v753 = vunpack.c.l.b16 %v745
        %v754 = vunpack.c.l.b16 %v746
        %v755 = vpack.c.b16 %v752, %v751
        %v756 = vpack.c.b16 %v754, %v753
        %v760 = vsel %vm699, %v742, 0
        %762 = vmatprep.subr.bf16.mxu0 0
        %763 = vmatpush1.bf16.msra.mxu0 %v755
        %764 = vmatprep.subr.bf16.mxu0 0
        %765 = vmatpush1.bf16.msra.mxu0 %v756
        %766 = vmatprep.subr.bf16.mxu0 0
        %767 = vmatpush1.bf16.msra.mxu0 0
        %768 = vmatprep.subr.bf16.mxu0 0
        %769 = vmatpush1.bf16.msra.mxu0 0
        %770 = vmatprep.subr.bf16.mxu0 0
        %771 = vmatpush1.bf16.msra.mxu0 0
        %772 = vmatprep.subr.bf16.mxu0 0
        %773 = vmatpush1.bf16.msra.mxu0 0
        %774 = vmatprep.subr.bf16.mxu0 0
        %775 = vmatpush1.bf16.msra.mxu0 0
        %776 = vmatprep.subr.bf16.mxu0 0
        %777 = vmatpush1.bf16.msra.mxu0 0
        %778 = vmatprep.subr.bf16.mxu0 0
        %779 = vmatpush1.bf16.msra.mxu0 0
        %780 = vmatprep.subr.bf16.mxu0 0
        %781 = vmatpush1.bf16.msra.mxu0 0
        %782 = vmatprep.subr.bf16.mxu0 0
        %783 = vmatpush1.bf16.msra.mxu0 0
        %784 = vmatprep.subr.bf16.mxu0 0
        %785 = vmatpush1.bf16.msra.mxu0 0
        %786 = vmatprep.subr.bf16.mxu0 0
        %787 = vmatpush1.bf16.msra.mxu0 0
        %788 = vmatprep.subr.bf16.mxu0 0
        %789 = vmatpush1.bf16.msra.mxu0 0
        %790 = vmatprep.subr.bf16.mxu0 0
        %791 = vmatpush1.bf16.msra.mxu0 0
        %792 = vmatprep.subr.bf16.mxu0 0
        %793 = vmatpush1.bf16.msra.mxu0 0
        %794 = vmatprep.mubr.bf16.mxu0 0
        %795 = vmatmul.mubr.bf16.gmra.mrb[0].mxu0 %v760
        %v796 = vpop.f32.mrb[0].mxu0
        %v797 = vadd.f32 0.0, %v796
        %v798 = vpop.f32.mrb[0].mxu0
        %v799 = vpop.f32.mrb[0].mxu0
        %v800 = vpop.f32.mrb[0].mxu0
        %801 = vdwg.mxu0
        %v802 = vpack.c.bf16 %v797, %v797
        %v803 = vld [vmem:[#allocation13] sm:$0xf]
        %v804 = vld [vmem:[#allocation13 + $0x4] sm:$0xf]
        %v805 = vld [vmem:[#allocation13 + $0x8] sm:$0xf]
        %v806 = vld [vmem:[#allocation13 + $0xc] sm:$0xf]
        %v811 = vunpack.c.l.b16 %v803
        %v812 = vunpack.c.l.b16 %v804
        %v813 = vunpack.c.l.b16 %v805
        %v814 = vunpack.c.l.b16 %v806
        %v815 = vpack.c.b16 %v812, %v811
        %v816 = vpack.c.b16 %v814, %v813
        %819 = vmatprep.subr.bf16.mxu0 0
        %820 = vmatpush1.bf16.msra.mxu0 %v815
        %821 = vmatprep.subr.bf16.mxu0 0
        %822 = vmatpush1.bf16.msra.mxu0 %v816
        %823 = vmatprep.subr.bf16.mxu0 0
        %824 = vmatpush1.bf16.msra.mxu0 0
        %825 = vmatprep.subr.bf16.mxu0 0
        %826 = vmatpush1.bf16.msra.mxu0 0
        %827 = vmatprep.subr.bf16.mxu0 0
        %828 = vmatpush1.bf16.msra.mxu0 0
        %829 = vmatprep.subr.bf16.mxu0 0
        %830 = vmatpush1.bf16.msra.mxu0 0
        %831 = vmatprep.subr.bf16.mxu0 0
        %832 = vmatpush1.bf16.msra.mxu0 0
        %833 = vmatprep.subr.bf16.mxu0 0
        %834 = vmatpush1.bf16.msra.mxu0 0
        %835 = vmatprep.subr.bf16.mxu0 0
        %836 = vmatpush1.bf16.msra.mxu0 0
        %837 = vmatprep.subr.bf16.mxu0 0
        %838 = vmatpush1.bf16.msra.mxu0 0
        %839 = vmatprep.subr.bf16.mxu0 0
        %840 = vmatpush1.bf16.msra.mxu0 0
        %841 = vmatprep.subr.bf16.mxu0 0
        %842 = vmatpush1.bf16.msra.mxu0 0
        %843 = vmatprep.subr.bf16.mxu0 0
        %844 = vmatpush1.bf16.msra.mxu0 0
        %845 = vmatprep.subr.bf16.mxu0 0
        %846 = vmatpush1.bf16.msra.mxu0 0
        %847 = vmatprep.subr.bf16.mxu0 0
        %848 = vmatpush1.bf16.msra.mxu0 0
        %849 = vmatprep.subr.bf16.mxu0 0
        %850 = vmatpush1.bf16.msra.mxu0 0
        %851 = vmatprep.mubr.bf16.mxu0 0
        %852 = vmatmul.mubr.bf16.gmra.mrb[0].mxu0 %v760
        %v853 = vpop.f32.mrb[0].mxu0
        %v854 = vadd.f32 0.0, %v853
        %v855 = vpop.f32.mrb[0].mxu0
        %v856 = vpop.f32.mrb[0].mxu0
        %v857 = vpop.f32.mrb[0].mxu0
        %858 = vdwg.mxu0
        %v859 = vpack.c.bf16 %v854, %v854
        %v860 = vld [vmem:[#allocation10] sm:$0x3]
        %v861 = vld [vmem:[%s7] sm:$0xf]
        %v862 = vld [vmem:[%s7 + $0x4] sm:$0xf]
        %v863 = vld [vmem:[%s7 + $0x8] sm:$0xf]
        %v864 = vld [vmem:[%s7 + $0xc] sm:$0xf]
        %v869 = vunpack.c.l.b16 %v861
        %v870 = vunpack.c.l.b16 %v862
        %v871 = vunpack.c.l.b16 %v863
        %v872 = vunpack.c.l.b16 %v864
        %v873 = vpack.c.b16 %v870, %v869
        %v874 = vpack.c.b16 %v872, %v871
        %v878 = vsel %vm699, %v860, 0
        %880 = vmatprep.subr.bf16.mxu0 0
        %881 = vmatpush1.bf16.msra.mxu0 %v873
        %882 = vmatprep.subr.bf16.mxu0 0
        %883 = vmatpush1.bf16.msra.mxu0 %v874
        %884 = vmatprep.subr.bf16.mxu0 0
        %885 = vmatpush1.bf16.msra.mxu0 0
        %886 = vmatprep.subr.bf16.mxu0 0
        %887 = vmatpush1.bf16.msra.mxu0 0
        %888 = vmatprep.subr.bf16.mxu0 0
        %889 = vmatpush1.bf16.msra.mxu0 0
        %890 = vmatprep.subr.bf16.mxu0 0
        %891 = vmatpush1.bf16.msra.mxu0 0
        %892 = vmatprep.subr.bf16.mxu0 0
        %893 = vmatpush1.bf16.msra.mxu0 0
        %894 = vmatprep.subr.bf16.mxu0 0
        %895 = vmatpush1.bf16.msra.mxu0 0
        %896 = vmatprep.subr.bf16.mxu0 0
        %897 = vmatpush1.bf16.msra.mxu0 0
        %898 = vmatprep.subr.bf16.mxu0 0
        %899 = vmatpush1.bf16.msra.mxu0 0
        %900 = vmatprep.subr.bf16.mxu0 0
        %901 = vmatpush1.bf16.msra.mxu0 0
        %902 = vmatprep.subr.bf16.mxu0 0
        %903 = vmatpush1.bf16.msra.mxu0 0
        %904 = vmatprep.subr.bf16.mxu0 0
        %905 = vmatpush1.bf16.msra.mxu0 0
        %906 = vmatprep.subr.bf16.mxu0 0
        %907 = vmatpush1.bf16.msra.mxu0 0
        %908 = vmatprep.subr.bf16.mxu0 0
        %909 = vmatpush1.bf16.msra.mxu0 0
        %910 = vmatprep.subr.bf16.mxu0 0
        %911 = vmatpush1.bf16.msra.mxu0 0
        %912 = vmatprep.mubr.bf16.mxu0 0
        %913 = vmatmul.mubr.bf16.gmra.mrb[0].mxu0 %v878
        %v914 = vpop.f32.mrb[0].mxu0
        %v915 = vadd.f32 0.0, %v914
        %v916 = vpop.f32.mrb[0].mxu0
        %v917 = vpop.f32.mrb[0].mxu0
        %v918 = vpop.f32.mrb[0].mxu0
        %919 = vdwg.mxu0
        %v920 = vpack.c.bf16 %v915, %v915
        %v921 = vld [vmem:[%s561] sm:$0x1]
        %v923 = vlaneseq
        %v924 = vshrl.u32 %v923, 7
        %v925 = vsub.s32 0, %v924
        %v926 = vrot.slane %v921, %v925
        %v929 = vsel %vm655, %v920, 0
        %v932 = vsel %vm655, %v802, 0
        %934 = vmatprep.subr.bf16.mxu0 0
        %935 = vmatpush1.bf16.xpose.msra.mxu0 %v932
        %936 = vmatprep.subr.bf16.mxu0 0
        %937 = vmatpush1.bf16.xpose.msra.mxu0 0
        %938 = vmatprep.subr.bf16.mxu0 0
        %939 = vmatpush1.bf16.xpose.msra.mxu0 0
        %940 = vmatprep.subr.bf16.mxu0 0
        %941 = vmatpush1.bf16.xpose.msra.mxu0 0
        %942 = vmatprep.subr.bf16.mxu0 0
        %943 = vmatpush1.bf16.xpose.msra.mxu0 0
        %944 = vmatprep.subr.bf16.mxu0 0
        %945 = vmatpush1.bf16.xpose.msra.mxu0 0
        %946 = vmatprep.subr.bf16.mxu0 0
        %947 = vmatpush1.bf16.xpose.msra.mxu0 0
        %948 = vmatprep.subr.bf16.mxu0 0
        %949 = vmatpush1.bf16.xpose.msra.mxu0 0
        %950 = vmatprep.subr.bf16.mxu0 0
        %951 = vmatpush1.bf16.xpose.msra.mxu0 0
        %952 = vmatprep.subr.bf16.mxu0 0
        %953 = vmatpush1.bf16.xpose.msra.mxu0 0
        %954 = vmatprep.subr.bf16.mxu0 0
        %955 = vmatpush1.bf16.xpose.msra.mxu0 0
        %956 = vmatprep.subr.bf16.mxu0 0
        %957 = vmatpush1.bf16.xpose.msra.mxu0 0
        %958 = vmatprep.subr.bf16.mxu0 0
        %959 = vmatpush1.bf16.xpose.msra.mxu0 0
        %960 = vmatprep.subr.bf16.mxu0 0
        %961 = vmatpush1.bf16.xpose.msra.mxu0 0
        %962 = vmatprep.subr.bf16.mxu0 0
        %963 = vmatpush1.bf16.xpose.msra.mxu0 0
        %964 = vmatprep.subr.bf16.mxu0 0
        %965 = vmatpush1.bf16.xpose.msra.mxu0 0
        %966 = vmatprep.mubr.bf16.mxu0 0
        %967 = vmatmul.mubr.bf16.gmra.mrb[0].mxu0 %v929
        %v968 = vpop.f32.mrb[0].mxu0
        %v969 = vadd.f32 0.0, %v968
        %v970 = vpop.f32.mrb[0].mxu0
        %v971 = vpop.f32.mrb[0].mxu0
        %v972 = vpop.f32.mrb[0].mxu0
        %973 = vdwg.mxu0
        %v974 = vmul.f32 %v969, 0.25
        %v975 = vadd.f32 %v974, %v926
        %vm976 = vcmask 60416
        %v977 = vsel %vm976, %v975, -inf
        %978 = vmax.xlane.f32.xlu0 %v977
        %v979 = vpop.xlane.xlu0 %978
        %v980 = vsub.f32 %v975, %v979
        %v981 = vmul.f32 %v980, 1.442695
        %v982 = vpow.pop %v981
        %v983 = vsel %vm976, %v982, 0.0
        %984 = vadd.xlane.f32.xlu0 %v983
        %v985 = vpop.xlane.xlu0 %984
        %v986 = vrcp.pop %v985
        %v987 = vmul.f32 %v982, %v986
        %v988 = vpack.c.bf16 %v987, %v987
        %990 = vrot.lane.b32.xlu0 %v802, 96
        %v991 = vpop.permute.xlu0 %990
        %vm992 = vcmask 64512
        %v994 = vsel %vm992, %v988, 0
        %vm996 = vcmask 1043456
        %v998 = vsel %vm996, %v991, 0
        %1000 = vmatprep.subr.bf16.mxu0 0
        %1001 = vmatpush1.bf16.msra.mxu0 %v998
        %1002 = vmatprep.subr.bf16.mxu0 0
        %1003 = vmatpush1.bf16.msra.mxu0 0
        %1004 = vmatprep.subr.bf16.mxu0 0
        %1005 = vmatpush1.bf16.msra.mxu0 0
        %1006 = vmatprep.subr.bf16.mxu0 0
        %1007 = vmatpush1.bf16.msra.mxu0 0
        %1008 = vmatprep.subr.bf16.mxu0 0
        %1009 = vmatpush1.bf16.msra.mxu0 0
        %1010 = vmatprep.subr.bf16.mxu0 0
        %1011 = vmatpush1.bf16.msra.mxu0 0
        %1012 = vmatprep.subr.bf16.mxu0 0
        %1013 = vmatpush1.bf16.msra.mxu0 0
        %1014 = vmatprep.subr.bf16.mxu0 0
        %1015 = vmatpush1.bf16.msra.mxu0 0
        %1016 = vmatprep.subr.bf16.mxu0 0
        %1017 = vmatpush1.bf16.msra.mxu0 0
        %1018 = vmatprep.subr.bf16.mxu0 0
        %1019 = vmatpush1.bf16.msra.mxu0 0
        %1020 = vmatprep.subr.bf16.mxu0 0
        %1021 = vmatpush1.bf16.msra.mxu0 0
        %1022 = vmatprep.subr.bf16.mxu0 0
        %1023 = vmatpush1.bf16.msra.mxu0 0
        %1024 = vmatprep.subr.bf16.mxu0 0
        %1025 = vmatpush1.bf16.msra.mxu0 0
        %1026 = vmatprep.subr.bf16.mxu0 0
        %1027 = vmatpush1.bf16.msra.mxu0 0
        %1028 = vmatprep.subr.bf16.mxu0 0
        %1029 = vmatpush1.bf16.msra.mxu0 0
        %1030 = vmatprep.subr.bf16.mxu0 0
        %1031 = vmatpush1.bf16.msra.mxu0 0
        %1032 = vmatprep.mubr.bf16.mxu0 0
        %1033 = vmatmul.mubr.bf16.gmra.mrb[0].mxu0 %v994
        %v1034 = vpop.f32.mrb[0].mxu0
        %v1035 = vadd.f32 0.0, %v1034
        %v1036 = vpop.f32.mrb[0].mxu0
        %v1037 = vpop.f32.mrb[0].mxu0
        %v1038 = vpop.f32.mrb[0].mxu0
        %1039 = vdwg.mxu0
        %1041 = vrot.lane.b32.xlu0 %v920, 112
        %v1042 = vpop.permute.xlu0 %1041
        %1043 = vrot.lane.b32.xlu0 %v802, 112
        %v1044 = vpop.permute.xlu0 %1043
        %v1046 = vsel %vm655, %v1042, 0
        %v1049 = vsel %vm655, %v1044, 0
        %1051 = vmatprep.subr.bf16.mxu0 0
        %1052 = vmatpush1.bf16.xpose.msra.mxu0 %v1049
        %1053 = vmatprep.subr.bf16.mxu0 0
        %1054 = vmatpush1.bf16.xpose.msra.mxu0 0
        %1055 = vmatprep.subr.bf16.mxu0 0
        %1056 = vmatpush1.bf16.xpose.msra.mxu0 0
        %1057 = vmatprep.subr.bf16.mxu0 0
        %1058 = vmatpush1.bf16.xpose.msra.mxu0 0
        %1059 = vmatprep.subr.bf16.mxu0 0
        %1060 = vmatpush1.bf16.xpose.msra.mxu0 0
        %1061 = vmatprep.subr.bf16.mxu0 0
        %1062 = vmatpush1.bf16.xpose.msra.mxu0 0
        %1063 = vmatprep.subr.bf16.mxu0 0
        %1064 = vmatpush1.bf16.xpose.msra.mxu0 0
        %1065 = vmatprep.subr.bf16.mxu0 0
        %1066 = vmatpush1.bf16.xpose.msra.mxu0 0
        %1067 = vmatprep.subr.bf16.mxu0 0
        %1068 = vmatpush1.bf16.xpose.msra.mxu0 0
        %1069 = vmatprep.subr.bf16.mxu0 0
        %1070 = vmatpush1.bf16.xpose.msra.mxu0 0
        %1071 = vmatprep.subr.bf16.mxu0 0
        %1072 = vmatpush1.bf16.xpose.msra.mxu0 0
        %1073 = vmatprep.subr.bf16.mxu0 0
        %1074 = vmatpush1.bf16.xpose.msra.mxu0 0
        %1075 = vmatprep.subr.bf16.mxu0 0
        %1076 = vmatpush1.bf16.xpose.msra.mxu0 0
        %1077 = vmatprep.subr.bf16.mxu0 0
        %1078 = vmatpush1.bf16.xpose.msra.mxu0 0
        %1079 = vmatprep.subr.bf16.mxu0 0
        %1080 = vmatpush1.bf16.xpose.msra.mxu0 0
        %1081 = vmatprep.subr.bf16.mxu0 0
        %1082 = vmatpush1.bf16.xpose.msra.mxu0 0
        %1083 = vmatprep.mubr.bf16.mxu0 0
        %1084 = vmatmul.mubr.bf16.gmra.mrb[0].mxu0 %v1046
        %v1085 = vpop.f32.mrb[0].mxu0
        %v1086 = vadd.f32 0.0, %v1085
        %v1087 = vpop.f32.mrb[0].mxu0
        %v1088 = vpop.f32.mrb[0].mxu0
        %v1089 = vpop.f32.mrb[0].mxu0
        %1090 = vdwg.mxu0
        %v1091 = vmul.f32 %v1086, 0.25
        %v1092 = vadd.f32 %v1091, %v926
        %v1093 = vsel %vm976, %v1092, -inf
        %1094 = vmax.xlane.f32.xlu0 %v1093
        %v1095 = vpop.xlane.xlu0 %1094
        %v1096 = vsub.f32 %v1092, %v1095
        %v1097 = vmul.f32 %v1096, 1.442695
        %v1098 = vpow.pop %v1097
        %v1099 = vsel %vm976, %v1098, 0.0
        %1100 = vadd.xlane.f32.xlu0 %v1099
        %v1101 = vpop.xlane.xlu0 %1100
        %v1102 = vrcp.pop %v1101
        %v1103 = vmul.f32 %v1098, %v1102
        %v1104 = vpack.c.bf16 %v1103, %v1103
        %1105 = vrot.lane.b32.xlu0 %v802, 80
        %v1106 = vpop.permute.xlu0 %1105
        %v1108 = vsel %vm992, %v1104, 0
        %v1111 = vsel %vm996, %v1106, 0
        %1113 = vmatprep.subr.bf16.mxu0 0
        %1114 = vmatpush1.bf16.msra.mxu0 %v1111
        %1115 = vmatprep.subr.bf16.mxu0 0
        %1116 = vmatpush1.bf16.msra.mxu0 0
        %1117 = vmatprep.subr.bf16.mxu0 0
        %1118 = vmatpush1.bf16.msra.mxu0 0
        %1119 = vmatprep.subr.bf16.mxu0 0
        %1120 = vmatpush1.bf16.msra.mxu0 0
        %1121 = vmatprep.subr.bf16.mxu0 0
        %1122 = vmatpush1.bf16.msra.mxu0 0
        %1123 = vmatprep.subr.bf16.mxu0 0
        %1124 = vmatpush1.bf16.msra.mxu0 0
        %1125 = vmatprep.subr.bf16.mxu0 0
        %1126 = vmatpush1.bf16.msra.mxu0 0
        %1127 = vmatprep.subr.bf16.mxu0 0
        %1128 = vmatpush1.bf16.msra.mxu0 0
        %1129 = vmatprep.subr.bf16.mxu0 0
        %1130 = vmatpush1.bf16.msra.mxu0 0
        %1131 = vmatprep.subr.bf16.mxu0 0
        %1132 = vmatpush1.bf16.msra.mxu0 0
        %1133 = vmatprep.subr.bf16.mxu0 0
        %1134 = vmatpush1.bf16.msra.mxu0 0
        %1135 = vmatprep.subr.bf16.mxu0 0
        %1136 = vmatpush1.bf16.msra.mxu0 0
        %1137 = vmatprep.subr.bf16.mxu0 0
        %1138 = vmatpush1.bf16.msra.mxu0 0
        %1139 = vmatprep.subr.bf16.mxu0 0
        %1140 = vmatpush1.bf16.msra.mxu0 0
        %1141 = vmatprep.subr.bf16.mxu0 0
        %1142 = vmatpush1.bf16.msra.mxu0 0
        %1143 = vmatprep.subr.bf16.mxu0 0
        %1144 = vmatpush1.bf16.msra.mxu0 0
        %1145 = vmatprep.mubr.bf16.mxu0 0
        %1146 = vmatmul.mubr.bf16.gmra.mrb[0].mxu0 %v1108
        %v1147 = vpop.f32.mrb[0].mxu0
        %v1148 = vadd.f32 0.0, %v1147
        %v1149 = vpop.f32.mrb[0].mxu0
        %v1150 = vpop.f32.mrb[0].mxu0
        %v1151 = vpop.f32.mrb[0].mxu0
        %1152 = vdwg.mxu0
        %1154 = vrot.lane.b32.xlu0 %v1148, 16
        %v1155 = vpop.permute.xlu0 %1154
        %v1157 = vsel %vm655, %v1035, %v1155
        %v1158 = vpack.c.bf16 %v1157, %v1157
        %v1159 = vld [vmem:[%s9] sm:$0xf]
        %v1160 = vld [vmem:[%s9 + $0x4] sm:$0xf]
        %v1161 = vld [vmem:[%s9 + $0x8] sm:$0xf]
        %v1162 = vld [vmem:[%s9 + $0xc] sm:$0xf]
        %v1167 = vunpack.c.l.b16 %v1159
        %v1168 = vunpack.c.l.b16 %v1160
        %v1169 = vunpack.c.l.b16 %v1161
        %v1170 = vunpack.c.l.b16 %v1162
        %v1171 = vpack.c.b16 %v1168, %v1167
        %v1172 = vpack.c.b16 %v1170, %v1169
        %v1176 = vsel %vm699, %v1158, 0
        %1178 = vmatprep.subr.bf16.mxu0 0
        %1179 = vmatpush1.bf16.msra.mxu0 %v1171
        %1180 = vmatprep.subr.bf16.mxu0 0
        %1181 = vmatpush1.bf16.msra.mxu0 %v1172
        %1182 = vmatprep.subr.bf16.mxu0 0
        %1183 = vmatpush1.bf16.msra.mxu0 0
        %1184 = vmatprep.subr.bf16.mxu0 0
        %1185 = vmatpush1.bf16.msra.mxu0 0
        %1186 = vmatprep.subr.bf16.mxu0 0
        %1187 = vmatpush1.bf16.msra.mxu0 0
        %1188 = vmatprep.subr.bf16.mxu0 0
        %1189 = vmatpush1.bf16.msra.mxu0 0
        %1190 = vmatprep.subr.bf16.mxu0 0
        %1191 = vmatpush1.bf16.msra.mxu0 0
        %1192 = vmatprep.subr.bf16.mxu0 0
        %1193 = vmatpush1.bf16.msra.mxu0 0
        %1194 = vmatprep.subr.bf16.mxu0 0
        %1195 = vmatpush1.bf16.msra.mxu0 0
        %1196 = vmatprep.subr.bf16.mxu0 0
        %1197 = vmatpush1.bf16.msra.mxu0 0
        %1198 = vmatprep.subr.bf16.mxu0 0
        %1199 = vmatpush1.bf16.msra.mxu0 0
        %1200 = vmatprep.subr.bf16.mxu0 0
        %1201 = vmatpush1.bf16.msra.mxu0 0
        %1202 = vmatprep.subr.bf16.mxu0 0
        %1203 = vmatpush1.bf16.msra.mxu0 0
        %1204 = vmatprep.subr.bf16.mxu0 0
        %1205 = vmatpush1.bf16.msra.mxu0 0
        %1206 = vmatprep.subr.bf16.mxu0 0
        %1207 = vmatpush1.bf16.msra.mxu0 0
        %1208 = vmatprep.subr.bf16.mxu0 0
        %1209 = vmatpush1.bf16.msra.mxu0 0
        %1210 = vmatprep.mubr.bf16.mxu0 0
        %1211 = vmatmul.mubr.bf16.gmra.mrb[0].mxu0 %v1176
        %v1212 = vpop.f32.mrb[0].mxu0
        %v1213 = vadd.f32 0.0, %v1212
        %v1214 = vpop.f32.mrb[0].mxu0
        %v1215 = vpop.f32.mrb[0].mxu0
        %v1216 = vpop.f32.mrb[0].mxu0
        %1217 = vdwg.mxu0
        %v1218 = vpack.c.bf16 %v1213, %v1213
        %v1219 = vld [vmem:[#allocation11] sm:$0xf]
        %v1220 = vld [vmem:[#allocation11 + $0x4] sm:$0xf]
        %v1221 = vld [vmem:[#allocation11 + $0x8] sm:$0xf]
        %v1222 = vld [vmem:[#allocation11 + $0xc] sm:$0xf]
        %v1227 = vunpack.c.l.b16 %v1219
        %v1228 = vunpack.c.l.b16 %v1220
        %v1229 = vunpack.c.l.b16 %v1221
        %v1230 = vunpack.c.l.b16 %v1222
        %v1231 = vpack.c.b16 %v1228, %v1227
        %v1232 = vpack.c.b16 %v1230, %v1229
        %v1236 = vsel %vm699, %v1218, 0
        %1238 = vmatprep.subr.bf16.mxu0 0
        %1239 = vmatpush1.bf16.msra.mxu0 %v1231
        %1240 = vmatprep.subr.bf16.mxu0 0
        %1241 = vmatpush1.bf16.msra.mxu0 %v1232
        %1242 = vmatprep.subr.bf16.mxu0 0
        %1243 = vmatpush1.bf16.msra.mxu0 0
        %1244 = vmatprep.subr.bf16.mxu0 0
        %1245 = vmatpush1.bf16.msra.mxu0 0
        %1246 = vmatprep.subr.bf16.mxu0 0
        %1247 = vmatpush1.bf16.msra.mxu0 0
        %1248 = vmatprep.subr.bf16.mxu0 0
        %1249 = vmatpush1.bf16.msra.mxu0 0
        %1250 = vmatprep.subr.bf16.mxu0 0
        %1251 = vmatpush1.bf16.msra.mxu0 0
        %1252 = vmatprep.subr.bf16.mxu0 0
        %1253 = vmatpush1.bf16.msra.mxu0 0
        %1254 = vmatprep.subr.bf16.mxu0 0
        %1255 = vmatpush1.bf16.msra.mxu0 0
        %1256 = vmatprep.subr.bf16.mxu0 0
        %1257 = vmatpush1.bf16.msra.mxu0 0
        %1258 = vmatprep.subr.bf16.mxu0 0
        %1259 = vmatpush1.bf16.msra.mxu0 0
        %1260 = vmatprep.subr.bf16.mxu0 0
        %1261 = vmatpush1.bf16.msra.mxu0 0
        %1262 = vmatprep.subr.bf16.mxu0 0
        %1263 = vmatpush1.bf16.msra.mxu0 0
        %1264 = vmatprep.subr.bf16.mxu0 0
        %1265 = vmatpush1.bf16.msra.mxu0 0
        %1266 = vmatprep.subr.bf16.mxu0 0
        %1267 = vmatpush1.bf16.msra.mxu0 0
        %1268 = vmatprep.subr.bf16.mxu0 0
        %1269 = vmatpush1.bf16.msra.mxu0 0
        %1270 = vmatprep.mubr.bf16.mxu0 0
        %1271 = vmatmul.mubr.bf16.gmra.mrb[0].mxu0 %v1236
        %v1272 = vpop.f32.mrb[0].mxu0
        %v1273 = vadd.f32 0.0, %v1272
        %v1274 = vpop.f32.mrb[0].mxu0
        %v1275 = vpop.f32.mrb[0].mxu0
        %v1276 = vpop.f32.mrb[0].mxu0
        %1277 = vdwg.mxu0
        %v1278 = vmul.f32 %v1273, %v1273
        %v1279 = vmul.f32 %v1273, %v1278
        %v1280 = vmul.f32 %v1279, 0.044715
        %v1281 = vadd.f32 %v1273, %v1280
        %v1282 = vmul.f32 %v1281, 0.7978846
        %v1283 = vtanh.pop %v1282
        %v1284 = vadd.f32 %v1283, 1.0
        %v1285 = vmul.f32 %v1284, 0.5
        %v1286 = vmul.f32 %v1273, %v1285
        %v1287 = vpack.c.bf16 %v1286, %v1286
        %v1288 = vld [vmem:[%s11] sm:$0xf]
        %v1289 = vld [vmem:[%s11 + $0x4] sm:$0xf]
        %v1290 = vld [vmem:[%s11 + $0x8] sm:$0xf]
        %v1291 = vld [vmem:[%s11 + $0xc] sm:$0xf]
        %v1292 = vld [vmem:[%s11 + $0x10] sm:$0xf]
        %v1293 = vld [vmem:[%s11 + $0x14] sm:$0xf]
        %v1294 = vld [vmem:[%s11 + $0x18] sm:$0xf]
        %v1295 = vld [vmem:[%s11 + $0x1c] sm:$0xf]
        %v1304 = vunpack.c.l.b16 %v1288
        %v1305 = vunpack.c.l.b16 %v1289
        %v1306 = vunpack.c.l.b16 %v1290
        %v1307 = vunpack.c.l.b16 %v1291
        %v1308 = vunpack.c.l.b16 %v1292
        %v1309 = vunpack.c.l.b16 %v1293
        %v1310 = vunpack.c.l.b16 %v1294
        %v1311 = vunpack.c.l.b16 %v1295
        %v1312 = vpack.c.b16 %v1305, %v1304
        %v1313 = vpack.c.b16 %v1307, %v1306
        %v1314 = vpack.c.b16 %v1309, %v1308
        %v1315 = vpack.c.b16 %v1311, %v1310
        %vm1320 = vcmask 523264
        %v1322 = vsel %vm1320, %v1287, 0
        %1324 = vmatprep.subr.bf16.mxu0 0
        %1325 = vmatpush1.bf16.msra.mxu0 %v1312
        %1326 = vmatprep.subr.bf16.mxu0 0
        %1327 = vmatpush1.bf16.msra.mxu0 %v1313
        %1328 = vmatprep.subr.bf16.mxu0 0
        %1329 = vmatpush1.bf16.msra.mxu0 %v1314
        %1330 = vmatprep.subr.bf16.mxu0 0
        %1331 = vmatpush1.bf16.msra.mxu0 %v1315
        %1332 = vmatprep.subr.bf16.mxu0 0
        %1333 = vmatpush1.bf16.msra.mxu0 0
        %1334 = vmatprep.subr.bf16.mxu0 0
        %1335 = vmatpush1.bf16.msra.mxu0 0
        %1336 = vmatprep.subr.bf16.mxu0 0
        %1337 = vmatpush1.bf16.msra.mxu0 0
        %1338 = vmatprep.subr.bf16.mxu0 0
        %1339 = vmatpush1.bf16.msra.mxu0 0
        %1340 = vmatprep.subr.bf16.mxu0 0
        %1341 = vmatpush1.bf16.msra.mxu0 0
        %1342 = vmatprep.subr.bf16.mxu0 0
        %1343 = vmatpush1.bf16.msra.mxu0 0
        %1344 = vmatprep.subr.bf16.mxu0 0
        %1345 = vmatpush1.bf16.msra.mxu0 0
        %1346 = vmatprep.subr.bf16.mxu0 0
        %1347 = vmatpush1.bf16.msra.mxu0 0
        %1348 = vmatprep.subr.bf16.mxu0 0
        %1349 = vmatpush1.bf16.msra.mxu0 0
        %1350 = vmatprep.subr.bf16.mxu0 0
        %1351 = vmatpush1.bf16.msra.mxu0 0
        %1352 = vmatprep.subr.bf16.mxu0 0
        %1353 = vmatpush1.bf16.msra.mxu0 0
        %1354 = vmatprep.subr.bf16.mxu0 0
        %1355 = vmatpush1.bf16.msra.mxu0 0
        %1356 = vmatprep.mubr.bf16.mxu0 0
        %1357 = vmatmul.mubr.bf16.gmra.mrb[0].mxu0 %v1322
        %v1358 = vpop.f32.mrb[0].mxu0
        %v1359 = vadd.f32 0.0, %v1358
        %v1360 = vpop.f32.mrb[0].mxu0
        %v1361 = vpop.f32.mrb[0].mxu0
        %v1362 = vpop.f32.mrb[0].mxu0
        %1363 = vdwg.mxu0
        %v1364 = vadd.f32 %v1213, %v1359
        %v1365 = vpack.c.bf16 %v1364, %v1364
        %v1366 = vld [vmem:[%s13] sm:$0xf]
        %v1367 = vld [vmem:[%s13 + $0x4] sm:$0xf]
        %v1368 = vld [vmem:[%s13 + $0x8] sm:$0xf]
        %v1369 = vld [vmem:[%s13 + $0xc] sm:$0xf]
        %v1374 = vunpack.c.l.b16 %v1366
        %v1375 = vunpack.c.l.b16 %v1367
        %v1376 = vunpack.c.l.b16 %v1368
        %v1377 = vunpack.c.l.b16 %v1369
        %v1378 = vpack.c.b16 %v1375, %v1374
        %v1379 = vpack.c.b16 %v1377, %v1376
        %v1383 = vsel %vm699, %v1365, 0
        %1385 = vmatprep.subr.bf16.mxu0 0
        %1386 = vmatpush1.bf16.msra.mxu0 %v1378
        %1387 = vmatprep.subr.bf16.mxu0 0
        %1388 = vmatpush1.bf16.msra.mxu0 %v1379
        %1389 = vmatprep.subr.bf16.mxu0 0
        %1390 = vmatpush1.bf16.msra.mxu0 0
        %1391 = vmatprep.subr.bf16.mxu0 0
        %1392 = vmatpush1.bf16.msra.mxu0 0
        %1393 = vmatprep.subr.bf16.mxu0 0
        %1394 = vmatpush1.bf16.msra.mxu0 0
        %1395 = vmatprep.subr.bf16.mxu0 0
        %1396 = vmatpush1.bf16.msra.mxu0 0
        %1397 = vmatprep.subr.bf16.mxu0 0
        %1398 = vmatpush1.bf16.msra.mxu0 0
        %1399 = vmatprep.subr.bf16.mxu0 0
        %1400 = vmatpush1.bf16.msra.mxu0 0
        %1401 = vmatprep.subr.bf16.mxu0 0
        %1402 = vmatpush1.bf16.msra.mxu0 0
        %1403 = vmatprep.subr.bf16.mxu0 0
        %1404 = vmatpush1.bf16.msra.mxu0 0
        %1405 = vmatprep.subr.bf16.mxu0 0
        %1406 = vmatpush1.bf16.msra.mxu0 0
        %1407 = vmatprep.subr.bf16.mxu0 0
        %1408 = vmatpush1.bf16.msra.mxu0 0
        %1409 = vmatprep.subr.bf16.mxu0 0
        %1410 = vmatpush1.bf16.msra.mxu0 0
        %1411 = vmatprep.subr.bf16.mxu0 0
        %1412 = vmatpush1.bf16.msra.mxu0 0
        %1413 = vmatprep.subr.bf16.mxu0 0
        %1414 = vmatpush1.bf16.msra.mxu0 0
        %1415 = vmatprep.subr.bf16.mxu0 0
        %1416 = vmatpush1.bf16.msra.mxu0 0
        %1417 = vmatprep.mubr.bf16.mxu0 0
        %1418 = vmatmul.mubr.bf16.gmra.mrb[0].mxu0 %v1383
        %v1419 = vpop.f32.mrb[0].mxu0
        %v1420 = vadd.f32 0.0, %v1419
        %v1421 = vpop.f32.mrb[0].mxu0
        %v1422 = vpop.f32.mrb[0].mxu0
        %v1423 = vpop.f32.mrb[0].mxu0
        %1424 = vdwg.mxu0
        %v1425 = vpack.c.bf16 %v1420, %v1420
        %v1427 = vsel %vm655, %v859, 0
        %v1430 = vsel %vm655, %v1425, 0
        %1432 = vmatprep.subr.bf16.mxu0 0
        %1433 = vmatpush1.bf16.xpose.msra.mxu0 %v1430
        %1434 = vmatprep.subr.bf16.mxu0 0
        %1435 = vmatpush1.bf16.xpose.msra.mxu0 0
        %1436 = vmatprep.subr.bf16.mxu0 0
        %1437 = vmatpush1.bf16.xpose.msra.mxu0 0
        %1438 = vmatprep.subr.bf16.mxu0 0
        %1439 = vmatpush1.bf16.xpose.msra.mxu0 0
        %1440 = vmatprep.subr.bf16.mxu0 0
        %1441 = vmatpush1.bf16.xpose.msra.mxu0 0
        %1442 = vmatprep.subr.bf16.mxu0 0
        %1443 = vmatpush1.bf16.xpose.msra.mxu0 0
        %1444 = vmatprep.subr.bf16.mxu0 0
        %1445 = vmatpush1.bf16.xpose.msra.mxu0 0
        %1446 = vmatprep.subr.bf16.mxu0 0
        %1447 = vmatpush1.bf16.xpose.msra.mxu0 0
        %1448 = vmatprep.subr.bf16.mxu0 0
        %1449 = vmatpush1.bf16.xpose.msra.mxu0 0
        %1450 = vmatprep.subr.bf16.mxu0 0
        %1451 = vmatpush1.bf16.xpose.msra.mxu0 0
        %1452 = vmatprep.subr.bf16.mxu0 0
        %1453 = vmatpush1.bf16.xpose.msra.mxu0 0
        %1454 = vmatprep.subr.bf16.mxu0 0
        %1455 = vmatpush1.bf16.xpose.msra.mxu0 0
        %1456 = vmatprep.subr.bf16.mxu0 0
        %1457 = vmatpush1.bf16.xpose.msra.mxu0 0
        %1458 = vmatprep.subr.bf16.mxu0 0
        %1459 = vmatpush1.bf16.xpose.msra.mxu0 0
        %1460 = vmatprep.subr.bf16.mxu0 0
        %1461 = vmatpush1.bf16.xpose.msra.mxu0 0
        %1462 = vmatprep.subr.bf16.mxu0 0
        %1463 = vmatpush1.bf16.xpose.msra.mxu0 0
        %1464 = vmatprep.mubr.bf16.mxu0 0
        %1465 = vmatmul.mubr.bf16.gmra.mrb[0].mxu0 %v1427
        %v1466 = vpop.f32.mrb[0].mxu0
        %v1467 = vadd.f32 0.0, %v1466
        %v1468 = vpop.f32.mrb[0].mxu0
        %v1469 = vpop.f32.mrb[0].mxu0
        %v1470 = vpop.f32.mrb[0].mxu0
        %1471 = vdwg.mxu0
        %v1472 = vmul.f32 %v1467, 0.25
        %vm1473 = vcmask 31744
        %v1474 = vsel %vm1473, %v1472, -inf
        %1475 = vmax.xlane.f32.xlu0 %v1474
        %v1476 = vpop.xlane.xlu0 %1475
        %v1477 = vsub.f32 %v1472, %v1476
        %v1478 = vmul.f32 %v1477, 1.442695
        %v1479 = vpow.pop %v1478
        %v1480 = vsel %vm1473, %v1479, 0.0
        %1481 = vadd.xlane.f32.xlu0 %v1480
        %v1482 = vpop.xlane.xlu0 %1481
        %v1483 = vrcp.pop %v1482
        %v1484 = vmul.f32 %v1479, %v1483
        %v1485 = vpack.c.bf16 %v1484, %v1484
        %1487 = vrot.lane.b32.xlu0 %v1425, 96
        %v1488 = vpop.permute.xlu0 %1487
        %v1490 = vsel %vm1473, %v1485, 0
        %vm1492 = vcmask 1041408
        %v1494 = vsel %vm1492, %v1488, 0
        %1496 = vmatprep.subr.bf16.mxu0 0
        %1497 = vmatpush1.bf16.msra.mxu0 %v1494
        %1498 = vmatprep.subr.bf16.mxu0 0
        %1499 = vmatpush1.bf16.msra.mxu0 0
        %1500 = vmatprep.subr.bf16.mxu0 0
        %1501 = vmatpush1.bf16.msra.mxu0 0
        %1502 = vmatprep.subr.bf16.mxu0 0
        %1503 = vmatpush1.bf16.msra.mxu0 0
        %1504 = vmatprep.subr.bf16.mxu0 0
        %1505 = vmatpush1.bf16.msra.mxu0 0
        %1506 = vmatprep.subr.bf16.mxu0 0
        %1507 = vmatpush1.bf16.msra.mxu0 0
        %1508 = vmatprep.subr.bf16.mxu0 0
        %1509 = vmatpush1.bf16.msra.mxu0 0
        %1510 = vmatprep.subr.bf16.mxu0 0
        %1511 = vmatpush1.bf16.msra.mxu0 0
        %1512 = vmatprep.subr.bf16.mxu0 0
        %1513 = vmatpush1.bf16.msra.mxu0 0
        %1514 = vmatprep.subr.bf16.mxu0 0
        %1515 = vmatpush1.bf16.msra.mxu0 0
        %1516 = vmatprep.subr.bf16.mxu0 0
        %1517 = vmatpush1.bf16.msra.mxu0 0
        %1518 = vmatprep.subr.bf16.mxu0 0
        %1519 = vmatpush1.bf16.msra.mxu0 0
        %1520 = vmatprep.subr.bf16.mxu0 0
        %1521 = vmatpush1.bf16.msra.mxu0 0
        %1522 = vmatprep.subr.bf16.mxu0 0
        %1523 = vmatpush1.bf16.msra.mxu0 0
        %1524 = vmatprep.subr.bf16.mxu0 0
        %1525 = vmatpush1.bf16.msra.mxu0 0
        %1526 = vmatprep.subr.bf16.mxu0 0
        %1527 = vmatpush1.bf16.msra.mxu0 0
        %1528 = vmatprep.mubr.bf16.mxu0 0
        %1529 = vmatmul.mubr.bf16.gmra.mrb[0].mxu0 %v1490
        %v1530 = vpop.f32.mrb[0].mxu0
        %v1531 = vadd.f32 0.0, %v1530
        %v1532 = vpop.f32.mrb[0].mxu0
        %v1533 = vpop.f32.mrb[0].mxu0
        %v1534 = vpop.f32.mrb[0].mxu0
        %1535 = vdwg.mxu0
        %1537 = vrot.lane.b32.xlu0 %v859, 112
        %v1538 = vpop.permute.xlu0 %1537
        %1539 = vrot.lane.b32.xlu0 %v1425, 112
        %v1540 = vpop.permute.xlu0 %1539
        %v1542 = vsel %vm655, %v1538, 0
        %v1545 = vsel %vm655, %v1540, 0
        %1547 = vmatprep.subr.bf16.mxu0 0
        %1548 = vmatpush1.bf16.xpose.msra.mxu0 %v1545
        %1549 = vmatprep.subr.bf16.mxu0 0
        %1550 = vmatpush1.bf16.xpose.msra.mxu0 0
        %1551 = vmatprep.subr.bf16.mxu0 0
        %1552 = vmatpush1.bf16.xpose.msra.mxu0 0
        %1553 = vmatprep.subr.bf16.mxu0 0
        %1554 = vmatpush1.bf16.xpose.msra.mxu0 0
        %1555 = vmatprep.subr.bf16.mxu0 0
        %1556 = vmatpush1.bf16.xpose.msra.mxu0 0
        %1557 = vmatprep.subr.bf16.mxu0 0
        %1558 = vmatpush1.bf16.xpose.msra.mxu0 0
        %1559 = vmatprep.subr.bf16.mxu0 0
        %1560 = vmatpush1.bf16.xpose.msra.mxu0 0
        %1561 = vmatprep.subr.bf16.mxu0 0
        %1562 = vmatpush1.bf16.xpose.msra.mxu0 0
        %1563 = vmatprep.subr.bf16.mxu0 0
        %1564 = vmatpush1.bf16.xpose.msra.mxu0 0
        %1565 = vmatprep.subr.bf16.mxu0 0
        %1566 = vmatpush1.bf16.xpose.msra.mxu0 0
        %1567 = vmatprep.subr.bf16.mxu0 0
        %1568 = vmatpush1.bf16.xpose.msra.mxu0 0
        %1569 = vmatprep.subr.bf16.mxu0 0
        %1570 = vmatpush1.bf16.xpose.msra.mxu0 0
        %1571 = vmatprep.subr.bf16.mxu0 0
        %1572 = vmatpush1.bf16.xpose.msra.mxu0 0
        %1573 = vmatprep.subr.bf16.mxu0 0
        %1574 = vmatpush1.bf16.xpose.msra.mxu0 0
        %1575 = vmatprep.subr.bf16.mxu0 0
        %1576 = vmatpush1.bf16.xpose.msra.mxu0 0
        %1577 = vmatprep.subr.bf16.mxu0 0
        %1578 = vmatpush1.bf16.xpose.msra.mxu0 0
        %1579 = vmatprep.mubr.bf16.mxu0 0
        %1580 = vmatmul.mubr.bf16.gmra.mrb[0].mxu0 %v1542
        %v1581 = vpop.f32.mrb[0].mxu0
        %v1582 = vadd.f32 0.0, %v1581
        %v1583 = vpop.f32.mrb[0].mxu0
        %v1584 = vpop.f32.mrb[0].mxu0
        %v1585 = vpop.f32.mrb[0].mxu0
        %1586 = vdwg.mxu0
        %v1587 = vmul.f32 %v1582, 0.25
        %v1588 = vsel %vm1473, %v1587, -inf
        %1589 = vmax.xlane.f32.xlu0 %v1588
        %v1590 = vpop.xlane.xlu0 %1589
        %v1591 = vsub.f32 %v1587, %v1590
        %v1592 = vmul.f32 %v1591, 1.442695
        %v1593 = vpow.pop %v1592
        %v1594 = vsel %vm1473, %v1593, 0.0
        %1595 = vadd.xlane.f32.xlu0 %v1594
        %v1596 = vpop.xlane.xlu0 %1595
        %v1597 = vrcp.pop %v1596
        %v1598 = vmul.f32 %v1593, %v1597
        %v1599 = vpack.c.bf16 %v1598, %v1598
        %1600 = vrot.lane.b32.xlu0 %v1425, 80
        %v1601 = vpop.permute.xlu0 %1600
        %v1603 = vsel %vm1473, %v1599, 0
        %v1606 = vsel %vm1492, %v1601, 0
        %1608 = vmatprep.subr.bf16.mxu0 0
        %1609 = vmatpush1.bf16.msra.mxu0 %v1606
        %1610 = vmatprep.subr.bf16.mxu0 0
        %1611 = vmatpush1.bf16.msra.mxu0 0
        %1612 = vmatprep.subr.bf16.mxu0 0
        %1613 = vmatpush1.bf16.msra.mxu0 0
        %1614 = vmatprep.subr.bf16.mxu0 0
        %1615 = vmatpush1.bf16.msra.mxu0 0
        %1616 = vmatprep.subr.bf16.mxu0 0
        %1617 = vmatpush1.bf16.msra.mxu0 0
        %1618 = vmatprep.subr.bf16.mxu0 0
        %1619 = vmatpush1.bf16.msra.mxu0 0
        %1620 = vmatprep.subr.bf16.mxu0 0
        %1621 = vmatpush1.bf16.msra.mxu0 0
        %1622 = vmatprep.subr.bf16.mxu0 0
        %1623 = vmatpush1.bf16.msra.mxu0 0
        %1624 = vmatprep.subr.bf16.mxu0 0
        %1625 = vmatpush1.bf16.msra.mxu0 0
        %1626 = vmatprep.subr.bf16.mxu0 0
        %1627 = vmatpush1.bf16.msra.mxu0 0
        %1628 = vmatprep.subr.bf16.mxu0 0
        %1629 = vmatpush1.bf16.msra.mxu0 0
        %1630 = vmatprep.subr.bf16.mxu0 0
        %1631 = vmatpush1.bf16.msra.mxu0 0
        %1632 = vmatprep.subr.bf16.mxu0 0
        %1633 = vmatpush1.bf16.msra.mxu0 0
        %1634 = vmatprep.subr.bf16.mxu0 0
        %1635 = vmatpush1.bf16.msra.mxu0 0
        %1636 = vmatprep.subr.bf16.mxu0 0
        %1637 = vmatpush1.bf16.msra.mxu0 0
        %1638 = vmatprep.subr.bf16.mxu0 0
        %1639 = vmatpush1.bf16.msra.mxu0 0
        %1640 = vmatprep.mubr.bf16.mxu0 0
        %1641 = vmatmul.mubr.bf16.gmra.mrb[0].mxu0 %v1603
        %v1642 = vpop.f32.mrb[0].mxu0
        %v1643 = vadd.f32 0.0, %v1642
        %v1644 = vpop.f32.mrb[0].mxu0
        %v1645 = vpop.f32.mrb[0].mxu0
        %v1646 = vpop.f32.mrb[0].mxu0
        %1647 = vdwg.mxu0
        %1649 = vrot.lane.b32.xlu0 %v1643, 16
        %v1650 = vpop.permute.xlu0 %1649
        %v1652 = vsel %vm655, %v1531, %v1650
        %v1653 = vpack.c.bf16 %v1652, %v1652
        %v1654 = vld [vmem:[#allocation14] sm:$0xf]
        %v1655 = vld [vmem:[#allocation14 + $0x4] sm:$0xf]
        %v1656 = vld [vmem:[#allocation14 + $0x8] sm:$0xf]
        %v1657 = vld [vmem:[#allocation14 + $0xc] sm:$0xf]
        %v1662 = vunpack.c.l.b16 %v1654
        %v1663 = vunpack.c.l.b16 %v1655
        %v1664 = vunpack.c.l.b16 %v1656
        %v1665 = vunpack.c.l.b16 %v1657
        %v1666 = vpack.c.b16 %v1663, %v1662
        %v1667 = vpack.c.b16 %v1665, %v1664
        %v1671 = vsel %vm699, %v1653, 0
        %1673 = vmatprep.subr.bf16.mxu0 0
        %1674 = vmatpush1.bf16.msra.mxu0 %v1666
        %1675 = vmatprep.subr.bf16.mxu0 0
        %1676 = vmatpush1.bf16.msra.mxu0 %v1667
        %1677 = vmatprep.subr.bf16.mxu0 0
        %1678 = vmatpush1.bf16.msra.mxu0 0
        %1679 = vmatprep.subr.bf16.mxu0 0
        %1680 = vmatpush1.bf16.msra.mxu0 0
        %1681 = vmatprep.subr.bf16.mxu0 0
        %1682 = vmatpush1.bf16.msra.mxu0 0
        %1683 = vmatprep.subr.bf16.mxu0 0
        %1684 = vmatpush1.bf16.msra.mxu0 0
        %1685 = vmatprep.subr.bf16.mxu0 0
        %1686 = vmatpush1.bf16.msra.mxu0 0
        %1687 = vmatprep.subr.bf16.mxu0 0
        %1688 = vmatpush1.bf16.msra.mxu0 0
        %1689 = vmatprep.subr.bf16.mxu0 0
        %1690 = vmatpush1.bf16.msra.mxu0 0
        %1691 = vmatprep.subr.bf16.mxu0 0
        %1692 = vmatpush1.bf16.msra.mxu0 0
        %1693 = vmatprep.subr.bf16.mxu0 0
        %1694 = vmatpush1.bf16.msra.mxu0 0
        %1695 = vmatprep.subr.bf16.mxu0 0
        %1696 = vmatpush1.bf16.msra.mxu0 0
        %1697 = vmatprep.subr.bf16.mxu0 0
        %1698 = vmatpush1.bf16.msra.mxu0 0
        %1699 = vmatprep.subr.bf16.mxu0 0
        %1700 = vmatpush1.bf16.msra.mxu0 0
        %1701 = vmatprep.subr.bf16.mxu0 0
        %1702 = vmatpush1.bf16.msra.mxu0 0
        %1703 = vmatprep.subr.bf16.mxu0 0
        %1704 = vmatpush1.bf16.msra.mxu0 0
        %1705 = vmatprep.mubr.bf16.mxu0 0
        %1706 = vmatmul.mubr.bf16.gmra.mrb[0].mxu0 %v1671
        %v1707 = vpop.f32.mrb[0].mxu0
        %v1708 = vadd.f32 0.0, %v1707
        %v1709 = vpop.f32.mrb[0].mxu0
        %v1710 = vpop.f32.mrb[0].mxu0
        %v1711 = vpop.f32.mrb[0].mxu0
        %1712 = vdwg.mxu0
        %v1713 = vadd.f32 %v738, %v1708
        %v1714 = vpack.c.bf16 %v1713, %v1713
        %vm1715 = vcmask 257024
        %1716 = vst.msk [vmem:[%s639] sm:$0xf] %vm1715, %v1714
        %s1717 = sand.u32 %s376, 1
        %s1718 = scalar_lea.sflag [#allocation4], %s1717
        %s1719 = sand.u32 %s376, 1
        %s1720 = smul.addr %s1719, 4
        %s1721 = scalar_lea.vmem [#allocation16], %s1720
        // Predicated region
        $region113: #{tpu_custom_call.1} parent=79 // pred_check
          %p1722 = pneg %p386
        $region114: #{tpu_custom_call.1} parent=79 // pred_check_branch
          %1724 = sbr.rel (%p1722) target = $region116
        $region115: #{tpu_custom_call.1} parent=79 // pred_region
          %s1726 = ssub.s32 64, 64
          %1727 = vsyncadd %s1718, %s1726
          %s1728 = smul.addr %s38, 64
          %s1729 = scalar_lea.hbm %s15, %s1728
          %s1731 = sshll.u32 %s1721, 4
          %s1732 = int_to_ptr.vmem [resolvable:$true] %s1731
          %1734 = dma.vmem_to_hbm [thread:$0]  %s1732, 64, %s1729, %s1718
        $region116: #{tpu_custom_call.1} parent=79 // pred_fallthru
          _
      $region80: #{tpu_custom_call.1} parent=5 // pred_fallthru
        _
      %p1735 = scmp.le.s32.totalorder 2, %s33
      // Predicated region
      $region117: #{tpu_custom_call.1} parent=5 // pred_check
        %p1736 = pneg %p1735
      $region118: #{tpu_custom_call.1} parent=5 // pred_check_branch
        %1738 = sbr.rel (%p1736) target = $region120
      $region119: #{tpu_custom_call.1} parent=5 // pred_region
        %s1739 = ssub.s32 %s33, 2
        // Predicated region
        $region121: #{tpu_custom_call.1} parent=119 // pred_check
          %p1740 = pneg %p392
        $region122: #{tpu_custom_call.1} parent=119 // pred_check_branch
          %1742 = sbr.rel (%p1740) target = $region124
        $region123: #{tpu_custom_call.1} parent=119 // pred_region
          %s1743 = sand.u32 %s377, 1
          %s1744 = scalar_lea.sflag [#allocation4], %s1743
          %s1745 = sand.u32 %s377, 1
          %s1746 = smul.addr %s1745, 4
          %s1747 = scalar_lea.vmem [#allocation16], %s1746
          %1748 = dma.done %s1744, 64
        $region124: #{tpu_custom_call.1} parent=119 // pred_fallthru
          _
      $region120: #{tpu_custom_call.1} parent=5 // pred_fallthru
        _
    $region6: #{tpu_custom_call.1} parent=1 // loop_footer
      %s37 = sadd.s32 1, %s33
    $region7: #{tpu_custom_call.1} parent=1 // loop_footer_branch
      %32 = sbr.rel target = $region3
    $region8: #{tpu_custom_call.1} parent=1 // loop_exit
      _
    %1749 = vsyncpa [#allocation3], 1
    %s1750 = scalar_lea.sflag [#allocation3], 1
    %1751 = vsyncpa %s1750, 1
    %1752 = vsyncpa [#allocation6], 1
    %s1753 = scalar_lea.sflag [#allocation6], 1
    %1754 = vsyncpa %s1753, 1
    %1755 = vsyncpa [#allocation9], 1
    %1756 = vsyncpa [#allocation12], 1
    %1757 = vsyncpa [#allocation15], 1
    %1758 = vsyncpa [#allocation4], 1
    %s1759 = scalar_lea.sflag [#allocation4], 1
    %1760 = vsyncpa %s1759, 1

</llo_original>
